<compile_context>
chip_gen: v7x
topology: tpu7x:2x2x1
jax: 0.10.0
libtpu: 0.0.40
codegen_flags: <defaults>
</compile_context>

<pallas_src>
from functools import partial

import jax
import jax.numpy as jnp
from jax.experimental import pallas as pl
from jax.experimental.pallas import tpu as pltpu


def dnn_kernel(training, x_ref, *refs):
    """Fused 4-layer MLP. refs layout:
       training:  m1, m2, m3, w1, b1, w2, b2, w3, b3, w4, b4, o
       eval:                  w1, b1, w2, b2, w3, b3, w4, b4, o
    """
    if training:
        m1_ref, m2_ref, m3_ref = refs[0], refs[1], refs[2]
        rest = refs[3:]
    else:
        m1_ref = m2_ref = m3_ref = None
        rest = refs
    (w1_ref, b1_ref, w2_ref, b2_ref,
     w3_ref, b3_ref, w4_ref, b4_ref, o_ref) = rest

    def layer(h, w_ref, b_ref, m_ref, relu):
        # bf16 operands on the MXU, f32 accumulation, f32 elementwise.
        h = jnp.dot(h.astype(jnp.bfloat16), w_ref[...],
                    preferred_element_type=jnp.float32)
        h = h + b_ref[...]
        if relu:
            h = jnp.maximum(h, 0.0)
        if m_ref is not None:
            # mask already holds {0.0, 2.0} == keep/(1-p) scaling for p=0.5
            h = h * m_ref[...]
        return h

    h = x_ref[...]
    h = layer(h, w1_ref, b1_ref, m1_ref, relu=True)
    h = layer(h, w2_ref, b2_ref, m2_ref, relu=True)
    h = layer(h, w3_ref, b3_ref, m3_ref, relu=True)
    h = layer(h, w4_ref, b4_ref, None,   relu=False)
    o_ref[...] = h.astype(o_ref.dtype)


def dnn_forward(x, params, *, key=None, training=True, batch_tile=None):
    """x: (B, input_dim) float32. params: dict with w1..w4 (in,out), b1..b4 (1,out)."""
    B, input_dim = x.shape
    hidden_dim = params["w1"].shape[1]
    output_dim = params["w4"].shape[1]

    if batch_tile is None:
        batch_tile = min(B, 256)
    assert B % batch_tile == 0 and batch_tile % 8 == 0, "batch_tile must divide B and be a multiple of 8"

    # Lane-dense output: pad final layer to a multiple of 128, slice after the call.
    out_pad = max(128, ((output_dim + 127) // 128) * 128)
    w4 = params["w4"]
    b4 = params["b4"]
    if out_pad != output_dim:
        w4 = jnp.pad(w4, ((0, 0), (0, out_pad - output_dim)))
        b4 = jnp.pad(b4, ((0, 0), (0, out_pad - output_dim)))

    # Weights -> bf16 once (MXU operands); biases stay f32.
    w1 = params["w1"].astype(jnp.bfloat16)
    w2 = params["w2"].astype(jnp.bfloat16)
    w3 = params["w3"].astype(jnp.bfloat16)
    w4 = w4.astype(jnp.bfloat16)
    b1, b2, b3 = params["b1"], params["b2"], params["b3"]

    grid = (B // batch_tile,)
    x_spec = pl.BlockSpec((batch_tile, input_dim), lambda i: (i, 0))
    h_spec = pl.BlockSpec((batch_tile, hidden_dim), lambda i: (i, 0))
    out_spec = pl.BlockSpec((batch_tile, out_pad), lambda i: (i, 0))
    w_spec = lambda shape: pl.BlockSpec(shape, lambda i: (0, 0))

    weight_specs = [
        w_spec((input_dim, hidden_dim)),  w_spec((1, hidden_dim)),   # l1
        w_spec((hidden_dim, hidden_dim)), w_spec((1, hidden_dim)),   # l2
        w_spec((hidden_dim, hidden_dim)), w_spec((1, hidden_dim)),   # l3
        w_spec((hidden_dim, out_pad)),    w_spec((1, out_pad)),      # l4
    ]
    weight_args = [w1, b1, w2, b2, w3, b3, w4, b4]

    if training:
        assert key is not None, "training=True requires a PRNG key for dropout"
        k1, k2, k3 = jax.random.split(key, 3)
        # keep-prob = 0.5; scaled mask {0, 2.0} so the kernel does one multiply.
        def mk(k):
            keep = jax.random.bernoulli(k, 0.5, (B, hidden_dim))
            return keep.astype(jnp.float32) * 2.0
        masks = [mk(k1), mk(k2), mk(k3)]
        in_specs = [x_spec] + [h_spec] * 3 + weight_specs
        args = [x] + masks + weight_args
    else:
        in_specs = [x_spec] + weight_specs
        args = [x] + weight_args

    out = pl.pallas_call(
        partial(dnn_kernel, training),
        out_shape=jax.ShapeDtypeStruct((B, out_pad), jnp.float32),
        grid=grid,
        in_specs=in_specs,
        out_specs=out_spec,
        compiler_params=pltpu.CompilerParams(
            dimension_semantics=("parallel",)),  # batch tiles independent -> megacore OK
    )(*args)

    return out[:, :output_dim]


def init_params(key, input_dim, hidden_dim, output_dim):
    """Deterministic PyTorch-style init: U(-1/sqrt(fan_in), 1/sqrt(fan_in))."""
    dims = [(input_dim, hidden_dim), (hidden_dim, hidden_dim),
            (hidden_dim, hidden_dim), (hidden_dim, output_dim)]
    params = {}
    for idx, (fan_in, fan_out) in enumerate(dims, start=1):
        key, kw, kb = jax.random.split(key, 3)
        bound = 1.0 / jnp.sqrt(float(fan_in))
        params[f"w{idx}"] = jax.random.uniform(
            kw, (fan_in, fan_out), jnp.float32, -bound, bound)
        params[f"b{idx}"] = jax.random.uniform(
            kb, (1, fan_out), jnp.float32, -bound, bound)
    return params


if __name__ == "__main__":
    # MNIST-like but shrunk; batch sized to exercise >1 grid step with a 128-row tile.
    batch, input_dim, hidden_dim, output_dim = 256, 256, 128, 16
    batch_tile = 128

    key = jax.random.PRNGKey(0)
    key, kx, kdrop = jax.random.split(key, 3)
    x = jax.random.normal(kx, (batch, input_dim), jnp.float32)
    params = init_params(key, input_dim, hidden_dim, output_dim)

    # Training-mode forward (dropout active, as in nn.Module default train mode).
    y_train = dnn_forward(x, params, key=kdrop, training=True, batch_tile=batch_tile)
    y_train = jax.block_until_ready(y_train)

    # Eval-mode forward (dropout == identity); check against pure-JAX reference
    # computed with the same bf16 matmul operands / f32 accumulation.
    y_eval = dnn_forward(x, params, training=False, batch_tile=batch_tile)
    y_eval = jax.block_until_ready(y_eval)

    def ref_eval(x, p):
        def lin(h, w, b):
            return jnp.dot(h.astype(jnp.bfloat16), w.astype(jnp.bfloat16),
                           preferred_element_type=jnp.float32) + b
        h = jnp.maximum(lin(x, p["w1"], p["b1"]), 0.0)
        h = jnp.maximum(lin(h, p["w2"], p["b2"]), 0.0)
        h = jnp.maximum(lin(h, p["w3"], p["b3"]), 0.0)
        return lin(h, p["w4"], p["b4"])

    ref = ref_eval(x, params)
    assert y_train.shape == (batch, output_dim)
    assert jnp.all(jnp.isfinite(y_train)), "training-mode output not finite"
    assert y_eval.shape == (batch, output_dim)
    assert jnp.allclose(y_eval, ref, atol=2e-2, rtol=2e-2), "eval-mode mismatch"

    print("KERNEL_OK")
</pallas_src>

<mosaic_0001>
module attributes {stable_mosaic.version = 11 : i64} {
  func.func @dnn_kernel(%arg0: i32, %arg1: memref<128x256xf32, #tpu.memory_space<vmem>>, %arg2: memref<128x128xf32, #tpu.memory_space<vmem>>, %arg3: memref<128x128xf32, #tpu.memory_space<vmem>>, %arg4: memref<128x128xf32, #tpu.memory_space<vmem>>, %arg5: memref<256x128xbf16, #tpu.memory_space<vmem>>, %arg6: memref<1x128xf32, #tpu.memory_space<vmem>>, %arg7: memref<128x128xbf16, #tpu.memory_space<vmem>>, %arg8: memref<1x128xf32, #tpu.memory_space<vmem>>, %arg9: memref<128x128xbf16, #tpu.memory_space<vmem>>, %arg10: memref<1x128xf32, #tpu.memory_space<vmem>>, %arg11: memref<128x128xbf16, #tpu.memory_space<vmem>>, %arg12: memref<1x128xf32, #tpu.memory_space<vmem>>, %arg13: memref<128x128xf32, #tpu.memory_space<vmem>>) attributes {dimension_semantics = [#tpu.dimension_semantics<parallel>], iteration_bounds = array<i64: 2>, scalar_prefetch = 0 : i64, scratch_operands = 0 : i64, tpu.core_type = #tpu.core_type<tc>, window_params = [{transform_indices = @transform_0, window_bounds = array<i64: 128, 256>}, {transform_indices = @transform_1, window_bounds = array<i64: 128, 128>}, {transform_indices = @transform_2, window_bounds = array<i64: 128, 128>}, {transform_indices = @transform_3, window_bounds = array<i64: 128, 128>}, {pipeline_mode = #tpu.pipeline_mode<synchronous>, transform_indices = @transform_4, window_bounds = array<i64: 256, 128>}, {pipeline_mode = #tpu.pipeline_mode<synchronous>, transform_indices = @transform_5, window_bounds = array<i64: 1, 128>}, {pipeline_mode = #tpu.pipeline_mode<synchronous>, transform_indices = @transform_6, window_bounds = array<i64: 128, 128>}, {pipeline_mode = #tpu.pipeline_mode<synchronous>, transform_indices = @transform_7, window_bounds = array<i64: 1, 128>}, {pipeline_mode = #tpu.pipeline_mode<synchronous>, transform_indices = @transform_8, window_bounds = array<i64: 128, 128>}, {pipeline_mode = #tpu.pipeline_mode<synchronous>, transform_indices = @transform_9, window_bounds = array<i64: 1, 128>}, {pipeline_mode = #tpu.pipeline_mode<synchronous>, transform_indices = @transform_10, window_bounds = array<i64: 128, 128>}, {pipeline_mode = #tpu.pipeline_mode<synchronous>, transform_indices = @transform_11, window_bounds = array<i64: 1, 128>}, {transform_indices = @transform_12, window_bounds = array<i64: 128, 128>}]} {
    %c0 = arith.constant 0 : index
    %c0_0 = arith.constant 0 : index
    %0 = vector.load %arg1[%c0, %c0_0] : memref<128x256xf32, #tpu.memory_space<vmem>>, vector<128x256xf32>
    %1 = arith.truncf %0 : vector<128x256xf32> to vector<128x256xbf16>
    %c0_1 = arith.constant 0 : index
    %c0_2 = arith.constant 0 : index
    %2 = vector.load %arg5[%c0_1, %c0_2] : memref<256x128xbf16, #tpu.memory_space<vmem>>, vector<256x128xbf16>
    %cst = arith.constant dense<0.000000e+00> : vector<128x128xf32>
    %3 = tpu.matmul %1, %2, %cst {dimension_numbers = #tpu.dot_dimension_numbers<[1], [0], [0], [1], [0, 0, 1, 1], [], []>} : vector<128x256xbf16>, vector<256x128xbf16>, vector<128x128xf32> -> vector<128x128xf32>
    %c0_3 = arith.constant 0 : index
    %c0_4 = arith.constant 0 : index
    %4 = vector.load %arg6[%c0_3, %c0_4] : memref<1x128xf32, #tpu.memory_space<vmem>>, vector<1x128xf32>
    %5 = vector.broadcast %4 : vector<1x128xf32> to vector<128x128xf32>
    %6 = arith.addf %3, %5 : vector<128x128xf32>
    %cst_5 = arith.constant 0.000000e+00 : f32
    %7 = vector.broadcast %cst_5 : f32 to vector<128x128xf32>
    %8 = arith.maximumf %6, %7 : vector<128x128xf32>
    %c0_6 = arith.constant 0 : index
    %c0_7 = arith.constant 0 : index
    %9 = vector.load %arg2[%c0_6, %c0_7] : memref<128x128xf32, #tpu.memory_space<vmem>>, vector<128x128xf32>
    %10 = arith.mulf %8, %9 : vector<128x128xf32>
    %11 = arith.truncf %10 : vector<128x128xf32> to vector<128x128xbf16>
    %c0_8 = arith.constant 0 : index
    %c0_9 = arith.constant 0 : index
    %12 = vector.load %arg7[%c0_8, %c0_9] : memref<128x128xbf16, #tpu.memory_space<vmem>>, vector<128x128xbf16>
    %cst_10 = arith.constant dense<0.000000e+00> : vector<128x128xf32>
    %13 = tpu.matmul %11, %12, %cst_10 {dimension_numbers = #tpu.dot_dimension_numbers<[1], [0], [0], [1], [0, 0, 1, 1], [], []>} : vector<128x128xbf16>, vector<128x128xbf16>, vector<128x128xf32> -> vector<128x128xf32>
    %c0_11 = arith.constant 0 : index
    %c0_12 = arith.constant 0 : index
    %14 = vector.load %arg8[%c0_11, %c0_12] : memref<1x128xf32, #tpu.memory_space<vmem>>, vector<1x128xf32>
    %15 = vector.broadcast %14 : vector<1x128xf32> to vector<128x128xf32>
    %16 = arith.addf %13, %15 : vector<128x128xf32>
    %cst_13 = arith.constant 0.000000e+00 : f32
    %17 = vector.broadcast %cst_13 : f32 to vector<128x128xf32>
    %18 = arith.maximumf %16, %17 : vector<128x128xf32>
    %c0_14 = arith.constant 0 : index
    %c0_15 = arith.constant 0 : index
    %19 = vector.load %arg3[%c0_14, %c0_15] : memref<128x128xf32, #tpu.memory_space<vmem>>, vector<128x128xf32>
    %20 = arith.mulf %18, %19 : vector<128x128xf32>
    %21 = arith.truncf %20 : vector<128x128xf32> to vector<128x128xbf16>
    %c0_16 = arith.constant 0 : index
    %c0_17 = arith.constant 0 : index
    %22 = vector.load %arg9[%c0_16, %c0_17] : memref<128x128xbf16, #tpu.memory_space<vmem>>, vector<128x128xbf16>
    %cst_18 = arith.constant dense<0.000000e+00> : vector<128x128xf32>
    %23 = tpu.matmul %21, %22, %cst_18 {dimension_numbers = #tpu.dot_dimension_numbers<[1], [0], [0], [1], [0, 0, 1, 1], [], []>} : vector<128x128xbf16>, vector<128x128xbf16>, vector<128x128xf32> -> vector<128x128xf32>
    %c0_19 = arith.constant 0 : index
    %c0_20 = arith.constant 0 : index
    %24 = vector.load %arg10[%c0_19, %c0_20] : memref<1x128xf32, #tpu.memory_space<vmem>>, vector<1x128xf32>
    %25 = vector.broadcast %24 : vector<1x128xf32> to vector<128x128xf32>
    %26 = arith.addf %23, %25 : vector<128x128xf32>
    %cst_21 = arith.constant 0.000000e+00 : f32
    %27 = vector.broadcast %cst_21 : f32 to vector<128x128xf32>
    %28 = arith.maximumf %26, %27 : vector<128x128xf32>
    %c0_22 = arith.constant 0 : index
    %c0_23 = arith.constant 0 : index
    %29 = vector.load %arg4[%c0_22, %c0_23] : memref<128x128xf32, #tpu.memory_space<vmem>>, vector<128x128xf32>
    %30 = arith.mulf %28, %29 : vector<128x128xf32>
    %31 = arith.truncf %30 : vector<128x128xf32> to vector<128x128xbf16>
    %c0_24 = arith.constant 0 : index
    %c0_25 = arith.constant 0 : index
    %32 = vector.load %arg11[%c0_24, %c0_25] : memref<128x128xbf16, #tpu.memory_space<vmem>>, vector<128x128xbf16>
    %cst_26 = arith.constant dense<0.000000e+00> : vector<128x128xf32>
    %33 = tpu.matmul %31, %32, %cst_26 {dimension_numbers = #tpu.dot_dimension_numbers<[1], [0], [0], [1], [0, 0, 1, 1], [], []>} : vector<128x128xbf16>, vector<128x128xbf16>, vector<128x128xf32> -> vector<128x128xf32>
    %c0_27 = arith.constant 0 : index
    %c0_28 = arith.constant 0 : index
    %34 = vector.load %arg12[%c0_27, %c0_28] : memref<1x128xf32, #tpu.memory_space<vmem>>, vector<1x128xf32>
    %35 = vector.broadcast %34 : vector<1x128xf32> to vector<128x128xf32>
    %36 = arith.addf %33, %35 : vector<128x128xf32>
    %c0_29 = arith.constant 0 : index
    %c0_30 = arith.constant 0 : index
    %37 = vector.load %arg13[%c0_29, %c0_30] : memref<128x128xf32, #tpu.memory_space<vmem>>, vector<128x128xf32>
    tpu.vector_store %arg13[%c0_29, %c0_30], %36 {strides = array<i32>} : memref<128x128xf32, #tpu.memory_space<vmem>>, vector<128x128xf32>,
    return
  }
  func.func @transform_0(%arg0: i32) -> (i32, i32) {
    %c0_i32 = arith.constant 0 : i32
    %c0_i32_0 = arith.constant 0 : i32
    return %arg0, %c0_i32 : i32, i32
  }
  func.func @transform_1(%arg0: i32) -> (i32, i32) {
    %c0_i32 = arith.constant 0 : i32
    %c0_i32_0 = arith.constant 0 : i32
    return %arg0, %c0_i32 : i32, i32
  }
  func.func @transform_2(%arg0: i32) -> (i32, i32) {
    %c0_i32 = arith.constant 0 : i32
    %c0_i32_0 = arith.constant 0 : i32
    return %arg0, %c0_i32 : i32, i32
  }
  func.func @transform_3(%arg0: i32) -> (i32, i32) {
    %c0_i32 = arith.constant 0 : i32
    %c0_i32_0 = arith.constant 0 : i32
    return %arg0, %c0_i32 : i32, i32
  }
  func.func @transform_4(%arg0: i32) -> (i32, i32) {
    %c0_i32 = arith.constant 0 : i32
    %c0_i32_0 = arith.constant 0 : i32
    %c0_i32_1 = arith.constant 0 : i32
    return %c0_i32, %c0_i32_0 : i32, i32
  }
  func.func @transform_5(%arg0: i32) -> (i32, i32) {
    %c0_i32 = arith.constant 0 : i32
    %c0_i32_0 = arith.constant 0 : i32
    %c0_i32_1 = arith.constant 0 : i32
    return %c0_i32, %c0_i32_0 : i32, i32
  }
  func.func @transform_6(%arg0: i32) -> (i32, i32) {
    %c0_i32 = arith.constant 0 : i32
    %c0_i32_0 = arith.constant 0 : i32
    %c0_i32_1 = arith.constant 0 : i32
    return %c0_i32, %c0_i32_0 : i32, i32
  }
  func.func @transform_7(%arg0: i32) -> (i32, i32) {
    %c0_i32 = arith.constant 0 : i32
    %c0_i32_0 = arith.constant 0 : i32
    %c0_i32_1 = arith.constant 0 : i32
    return %c0_i32, %c0_i32_0 : i32, i32
  }
  func.func @transform_8(%arg0: i32) -> (i32, i32) {
    %c0_i32 = arith.constant 0 : i32
    %c0_i32_0 = arith.constant 0 : i32
    %c0_i32_1 = arith.constant 0 : i32
    return %c0_i32, %c0_i32_0 : i32, i32
  }
  func.func @transform_9(%arg0: i32) -> (i32, i32) {
    %c0_i32 = arith.constant 0 : i32
    %c0_i32_0 = arith.constant 0 : i32
    %c0_i32_1 = arith.constant 0 : i32
    return %c0_i32, %c0_i32_0 : i32, i32
  }
  func.func @transform_10(%arg0: i32) -> (i32, i32) {
    %c0_i32 = arith.constant 0 : i32
    %c0_i32_0 = arith.constant 0 : i32
    %c0_i32_1 = arith.constant 0 : i32
    return %c0_i32, %c0_i32_0 : i32, i32
  }
  func.func @transform_11(%arg0: i32) -> (i32, i32) {
    %c0_i32 = arith.constant 0 : i32
    %c0_i32_0 = arith.constant 0 : i32
    %c0_i32_1 = arith.constant 0 : i32
    return %c0_i32, %c0_i32_0 : i32, i32
  }
  func.func @transform_12(%arg0: i32) -> (i32, i32) {
    %c0_i32 = arith.constant 0 : i32
    %c0_i32_0 = arith.constant 0 : i32
    return %arg0, %c0_i32 : i32, i32
  }
}

</mosaic_0001>

<llo_original>
// kernel: tpu_custom_call.1
$region0: #{tpu_custom_call.1}
  #allocation0 [shape = 'u32[]', space=smem, size = 0x4, offset = 0x4, fixed_abs, tag = 'smem constant byte address 0x4 - core index']
  #allocation1 [shape = 'u32[144,128]{1,0:T(1,128)}', space=vmem, size = 0x12000, scoped, tag = 'internal scratch']
  %s0 = inlined_call_operand.hbm [shape: f32[256,256], index: 0, kind: input, shape index: {}]
  %s1 = inlined_call_operand.hbm [shape: f32[256,128], index: 1, kind: input, shape index: {}]
  %s2 = inlined_call_operand.hbm [shape: f32[256,128], index: 2, kind: input, shape index: {}]
  %s3 = inlined_call_operand.hbm [shape: f32[256,128], index: 3, kind: input, shape index: {}]
  %s4 = inlined_call_operand.hbm [shape: bf16[256,128], index: 4, kind: input, shape index: {}]
  %s5 = inlined_call_operand.vmem [shape: f32[1,128], index: 5, kind: input, shape index: {}]
  %s6 = inlined_call_operand.hbm [shape: bf16[128,128], index: 6, kind: input, shape index: {}]
  %s7 = inlined_call_operand.vmem [shape: f32[1,128], index: 7, kind: input, shape index: {}]
  %s8 = inlined_call_operand.hbm [shape: bf16[128,128], index: 8, kind: input, shape index: {}]
  %s9 = inlined_call_operand.vmem [shape: f32[1,128], index: 9, kind: input, shape index: {}]
  %s10 = inlined_call_operand.hbm [shape: bf16[128,128], index: 10, kind: input, shape index: {}]
  %s11 = inlined_call_operand.vmem [shape: f32[1,128], index: 11, kind: input, shape index: {}]
  %s12 = inlined_call_operand.hbm [shape: f32[256,128], index: 12, kind: output, shape index: {}]
  %s13 = sld [smem:[#allocation0]]
  $region113: #{tpu_custom_call.1} parent=0
    _
  %s15 = ssub.s32 1, %s13
  %s16 = scalar_select 0, %s15, %s13
  $region1: #{tpu_custom_call.1} parent=0
    #allocation2 [shape = 'u8[262144]{0}', space=vmem, size = 0x40000, scoped, tag = 'input window, operand 0']
    #allocation3 [shape = 's32[2]{0}', space=sflag, size = 0x8, scoped, tag = 'scoped memory for tpu_custom_call.1']
    #allocation4 [shape = 's32[2]{0}', space=sflag, size = 0x8, scoped, tag = 'scoped memory for tpu_custom_call.1']
    #allocation5 [shape = 'u8[131072]{0}', space=vmem, size = 0x20000, scoped, tag = 'input window, operand 1']
    #allocation6 [shape = 's32[2]{0}', space=sflag, size = 0x8, scoped, tag = 'scoped memory for tpu_custom_call.1']
    #allocation7 [shape = 'u8[131072]{0}', space=vmem, size = 0x20000, scoped, tag = 'input window, operand 2']
    #allocation8 [shape = 'u8[131072]{0}', space=vmem, size = 0x20000, scoped, tag = 'input window, operand 3']
    #allocation9 [shape = 's32[2]{0}', space=sflag, size = 0x8, scoped, tag = 'scoped memory for tpu_custom_call.1']
    #allocation10 [shape = 'u8[65536]{0}', space=vmem, size = 0x10000, scoped, tag = 'input window, operand 4, single buffered']
    #allocation11 [shape = 'u8[32768]{0}', space=vmem, size = 0x8000, scoped, tag = 'input window, operand 6, single buffered']
    #allocation12 [shape = 's32[1]{0}', space=sflag, size = 0x4, scoped, tag = 'scoped memory for tpu_custom_call.1']
    #allocation13 [shape = 'u8[32768]{0}', space=vmem, size = 0x8000, scoped, tag = 'input window, operand 8, single buffered']
    #allocation14 [shape = 'u8[32768]{0}', space=vmem, size = 0x8000, scoped, tag = 'input window, operand 10, single buffered']
    #allocation15 [shape = 's32[1]{0}', space=sflag, size = 0x4, scoped, tag = 'scoped memory for tpu_custom_call.1']
    #allocation16 [shape = 'u8[131072]{0}', space=vmem, size = 0x20000, scoped, tag = 'output window, operand 0']
    %17 = vsyncpa [#allocation3], 0
    %s18 = scalar_lea.sflag [#allocation3], 1
    %19 = vsyncpa %s18, 0
    %20 = vsyncpa [#allocation6], 0
    %s21 = scalar_lea.sflag [#allocation6], 1
    %22 = vsyncpa %s21, 0
    %23 = vsyncpa [#allocation9], 0
    %s24 = scalar_lea.sflag [#allocation9], 1
    %25 = vsyncpa %s24, 0
    %26 = vsyncpa [#allocation12], 0
    %27 = vsyncpa [#allocation15], 0
    %28 = vsyncpa [#allocation4], 0
    %s29 = scalar_lea.sflag [#allocation4], 1
    %30 = vsyncpa %s29, 0
    loop: start=0, step=1, limit=4
    $region2: #{tpu_custom_call.1} parent=1 // loop_pre_header
      _
    $region3: #{tpu_custom_call.1} parent=1 // loop_header
      %s32 = sphi 0, %s36
      %p33 = scmp.ge.s32.totalorder %s32, 4
      %s42 = sphi 0, %s44
      %s45 = sphi 0, %s42
      %s46 = sphi 0, %s45
      %s62 = sphi 0, %s46
      %s68 = sphi 0, %s70
      %s71 = sphi 0, %s68
      %s72 = sphi 0, %s71
      %s88 = sphi 0, %s72
      %s94 = sphi 0, %s96
      %s97 = sphi 0, %s94
      %s98 = sphi 0, %s97
      %s114 = sphi 0, %s98
      %s120 = sphi 0, %s122
      %s123 = sphi 0, %s120
      %s124 = sphi 0, %s123
      %s140 = sphi 0, %s124
      %s144 = sphi 0, %s144
      %s146 = sphi 0, %s144
      %s147 = sphi 0, %s146
      %s161 = sphi 0, %s147
      %s165 = sphi 0, %s165
      %s167 = sphi 0, %s165
      %s168 = sphi 0, %s167
      %s182 = sphi 0, %s168
      %s186 = sphi 0, %s186
      %s188 = sphi 0, %s186
      %s189 = sphi 0, %s188
      %s203 = sphi 0, %s189
      %s207 = sphi 0, %s207
      %s209 = sphi 0, %s207
      %s210 = sphi 0, %s209
      %s224 = sphi 0, %s210
      %s228 = sphi 0, %s228
      %s230 = sphi 0, %s228
      %s231 = sphi 0, %s230
      %s245 = sphi 0, %s231
      %s249 = sphi 0, %s249
      %s251 = sphi 0, %s249
      %s252 = sphi 0, %s251
      %s266 = sphi 0, %s252
      %s270 = sphi 0, %s270
      %s272 = sphi 0, %s270
      %s273 = sphi 0, %s272
      %s287 = sphi 0, %s273
      %s291 = sphi 0, %s291
      %s293 = sphi 0, %s291
      %s294 = sphi 0, %s293
      %s308 = sphi 0, %s294
      %s314 = sphi 0, %s316
      %s317 = sphi 0, %s314
      %s318 = sphi 0, %s317
      %s334 = sphi 0, %s318
    $region4: #{tpu_custom_call.1} parent=1 // loop_header_branch
      %35 = sbr.rel (%p33) target = $region8
    $region5: #{tpu_custom_call.1} parent=1 // loop_body
      %s37 = ssub.s32 %s32, 1
      %s38 = ssub.s32 %s32, 2
      %s39 = sadd.s32 %s32, 1
      %s40 = ssub.s32 %s32, %s39
      %p41 = scmp.eq.s32.totalorder %s40, 0
      %s43 = sadd.s32 %s42, 1
      %s44 = scalar_select %p41, %s42, %s43
      %p47 = pneg %p41
      %p48 = scmp.eq.s32.totalorder %s32, 1
      %p49 = por %p47, %p48
      %p50 = scmp.ne.s32.totalorder %s42, %s45
      %p51 = scmp.eq.s32.totalorder %s32, 0
      %p52 = por %p50, %p51
      %p53 = scmp.ne.s32.totalorder %s42, %s45
      %p54 = scmp.eq.s32.totalorder %s37, 1
      %p55 = por %p53, %p54
      %p56 = scmp.ne.s32.totalorder %s45, %s46
      %p57 = scmp.eq.s32.totalorder %s37, 0
      %p58 = por %p56, %p57
      %p59 = scmp.ne.s32.totalorder %s45, %s46
      %p60 = scmp.eq.s32.totalorder %s38, 1
      %p61 = por %p59, %p60
      %p63 = scmp.ne.s32.totalorder %s46, %s62
      %p64 = scmp.eq.s32.totalorder %s38, 0
      %p65 = por %p63, %p64
      %s66 = ssub.s32 %s32, %s39
      %p67 = scmp.eq.s32.totalorder %s66, 0
      %s69 = sadd.s32 %s68, 1
      %s70 = scalar_select %p67, %s68, %s69
      %p73 = pneg %p67
      %p74 = scmp.eq.s32.totalorder %s32, 1
      %p75 = por %p73, %p74
      %p76 = scmp.ne.s32.totalorder %s68, %s71
      %p77 = scmp.eq.s32.totalorder %s32, 0
      %p78 = por %p76, %p77
      %p79 = scmp.ne.s32.totalorder %s68, %s71
      %p80 = scmp.eq.s32.totalorder %s37, 1
      %p81 = por %p79, %p80
      %p82 = scmp.ne.s32.totalorder %s71, %s72
      %p83 = scmp.eq.s32.totalorder %s37, 0
      %p84 = por %p82, %p83
      %p85 = scmp.ne.s32.totalorder %s71, %s72
      %p86 = scmp.eq.s32.totalorder %s38, 1
      %p87 = por %p85, %p86
      %p89 = scmp.ne.s32.totalorder %s72, %s88
      %p90 = scmp.eq.s32.totalorder %s38, 0
      %p91 = por %p89, %p90
      %s92 = ssub.s32 %s32, %s39
      %p93 = scmp.eq.s32.totalorder %s92, 0
      %s95 = sadd.s32 %s94, 1
      %s96 = scalar_select %p93, %s94, %s95
      %p99 = pneg %p93
      %p100 = scmp.eq.s32.totalorder %s32, 1
      %p101 = por %p99, %p100
      %p102 = scmp.ne.s32.totalorder %s94, %s97
      %p103 = scmp.eq.s32.totalorder %s32, 0
      %p104 = por %p102, %p103
      %p105 = scmp.ne.s32.totalorder %s94, %s97
      %p106 = scmp.eq.s32.totalorder %s37, 1
      %p107 = por %p105, %p106
      %p108 = scmp.ne.s32.totalorder %s97, %s98
      %p109 = scmp.eq.s32.totalorder %s37, 0
      %p110 = por %p108, %p109
      %p111 = scmp.ne.s32.totalorder %s97, %s98
      %p112 = scmp.eq.s32.totalorder %s38, 1
      %p113 = por %p111, %p112
      %p115 = scmp.ne.s32.totalorder %s98, %s114
      %p116 = scmp.eq.s32.totalorder %s38, 0
      %p117 = por %p115, %p116
      %s118 = ssub.s32 %s32, %s39
      %p119 = scmp.eq.s32.totalorder %s118, 0
      %s121 = sadd.s32 %s120, 1
      %s122 = scalar_select %p119, %s120, %s121
      %p125 = pneg %p119
      %p126 = scmp.eq.s32.totalorder %s32, 1
      %p127 = por %p125, %p126
      %p128 = scmp.ne.s32.totalorder %s120, %s123
      %p129 = scmp.eq.s32.totalorder %s32, 0
      %p130 = por %p128, %p129
      %p131 = scmp.ne.s32.totalorder %s120, %s123
      %p132 = scmp.eq.s32.totalorder %s37, 1
      %p133 = por %p131, %p132
      %p134 = scmp.ne.s32.totalorder %s123, %s124
      %p135 = scmp.eq.s32.totalorder %s37, 0
      %p136 = por %p134, %p135
      %p137 = scmp.ne.s32.totalorder %s123, %s124
      %p138 = scmp.eq.s32.totalorder %s38, 1
      %p139 = por %p137, %p138
      %p141 = scmp.ne.s32.totalorder %s124, %s140
      %p142 = scmp.eq.s32.totalorder %s38, 0
      %p143 = por %p141, %p142
      %s145 = sadd.s32 %s144, 1
      %p148 = scmp.eq.s32.totalorder %s32, 1
      %p149 = scmp.ne.s32.totalorder %s144, %s146
      %p150 = scmp.eq.s32.totalorder %s32, 0
      %p151 = por %p149, %p150
      %p152 = scmp.ne.s32.totalorder %s144, %s146
      %p153 = scmp.eq.s32.totalorder %s37, 1
      %p154 = por %p152, %p153
      %p155 = scmp.ne.s32.totalorder %s146, %s147
      %p156 = scmp.eq.s32.totalorder %s37, 0
      %p157 = por %p155, %p156
      %p158 = scmp.ne.s32.totalorder %s146, %s147
      %p159 = scmp.eq.s32.totalorder %s38, 1
      %p160 = por %p158, %p159
      %p162 = scmp.ne.s32.totalorder %s147, %s161
      %p163 = scmp.eq.s32.totalorder %s38, 0
      %p164 = por %p162, %p163
      %s166 = sadd.s32 %s165, 1
      %p169 = scmp.eq.s32.totalorder %s32, 1
      %p170 = scmp.ne.s32.totalorder %s165, %s167
      %p171 = scmp.eq.s32.totalorder %s32, 0
      %p172 = por %p170, %p171
      %p173 = scmp.ne.s32.totalorder %s165, %s167
      %p174 = scmp.eq.s32.totalorder %s37, 1
      %p175 = por %p173, %p174
      %p176 = scmp.ne.s32.totalorder %s167, %s168
      %p177 = scmp.eq.s32.totalorder %s37, 0
      %p178 = por %p176, %p177
      %p179 = scmp.ne.s32.totalorder %s167, %s168
      %p180 = scmp.eq.s32.totalorder %s38, 1
      %p181 = por %p179, %p180
      %p183 = scmp.ne.s32.totalorder %s168, %s182
      %p184 = scmp.eq.s32.totalorder %s38, 0
      %p185 = por %p183, %p184
      %s187 = sadd.s32 %s186, 1
      %p190 = scmp.eq.s32.totalorder %s32, 1
      %p191 = scmp.ne.s32.totalorder %s186, %s188
      %p192 = scmp.eq.s32.totalorder %s32, 0
      %p193 = por %p191, %p192
      %p194 = scmp.ne.s32.totalorder %s186, %s188
      %p195 = scmp.eq.s32.totalorder %s37, 1
      %p196 = por %p194, %p195
      %p197 = scmp.ne.s32.totalorder %s188, %s189
      %p198 = scmp.eq.s32.totalorder %s37, 0
      %p199 = por %p197, %p198
      %p200 = scmp.ne.s32.totalorder %s188, %s189
      %p201 = scmp.eq.s32.totalorder %s38, 1
      %p202 = por %p200, %p201
      %p204 = scmp.ne.s32.totalorder %s189, %s203
      %p205 = scmp.eq.s32.totalorder %s38, 0
      %p206 = por %p204, %p205
      %s208 = sadd.s32 %s207, 1
      %p211 = scmp.eq.s32.totalorder %s32, 1
      %p212 = scmp.ne.s32.totalorder %s207, %s209
      %p213 = scmp.eq.s32.totalorder %s32, 0
      %p214 = por %p212, %p213
      %p215 = scmp.ne.s32.totalorder %s207, %s209
      %p216 = scmp.eq.s32.totalorder %s37, 1
      %p217 = por %p215, %p216
      %p218 = scmp.ne.s32.totalorder %s209, %s210
      %p219 = scmp.eq.s32.totalorder %s37, 0
      %p220 = por %p218, %p219
      %p221 = scmp.ne.s32.totalorder %s209, %s210
      %p222 = scmp.eq.s32.totalorder %s38, 1
      %p223 = por %p221, %p222
      %p225 = scmp.ne.s32.totalorder %s210, %s224
      %p226 = scmp.eq.s32.totalorder %s38, 0
      %p227 = por %p225, %p226
      %s229 = sadd.s32 %s228, 1
      %p232 = scmp.eq.s32.totalorder %s32, 1
      %p233 = scmp.ne.s32.totalorder %s228, %s230
      %p234 = scmp.eq.s32.totalorder %s32, 0
      %p235 = por %p233, %p234
      %p236 = scmp.ne.s32.totalorder %s228, %s230
      %p237 = scmp.eq.s32.totalorder %s37, 1
      %p238 = por %p236, %p237
      %p239 = scmp.ne.s32.totalorder %s230, %s231
      %p240 = scmp.eq.s32.totalorder %s37, 0
      %p241 = por %p239, %p240
      %p242 = scmp.ne.s32.totalorder %s230, %s231
      %p243 = scmp.eq.s32.totalorder %s38, 1
      %p244 = por %p242, %p243
      %p246 = scmp.ne.s32.totalorder %s231, %s245
      %p247 = scmp.eq.s32.totalorder %s38, 0
      %p248 = por %p246, %p247
      %s250 = sadd.s32 %s249, 1
      %p253 = scmp.eq.s32.totalorder %s32, 1
      %p254 = scmp.ne.s32.totalorder %s249, %s251
      %p255 = scmp.eq.s32.totalorder %s32, 0
      %p256 = por %p254, %p255
      %p257 = scmp.ne.s32.totalorder %s249, %s251
      %p258 = scmp.eq.s32.totalorder %s37, 1
      %p259 = por %p257, %p258
      %p260 = scmp.ne.s32.totalorder %s251, %s252
      %p261 = scmp.eq.s32.totalorder %s37, 0
      %p262 = por %p260, %p261
      %p263 = scmp.ne.s32.totalorder %s251, %s252
      %p264 = scmp.eq.s32.totalorder %s38, 1
      %p265 = por %p263, %p264
      %p267 = scmp.ne.s32.totalorder %s252, %s266
      %p268 = scmp.eq.s32.totalorder %s38, 0
      %p269 = por %p267, %p268
      %s271 = sadd.s32 %s270, 1
      %p274 = scmp.eq.s32.totalorder %s32, 1
      %p275 = scmp.ne.s32.totalorder %s270, %s272
      %p276 = scmp.eq.s32.totalorder %s32, 0
      %p277 = por %p275, %p276
      %p278 = scmp.ne.s32.totalorder %s270, %s272
      %p279 = scmp.eq.s32.totalorder %s37, 1
      %p280 = por %p278, %p279
      %p281 = scmp.ne.s32.totalorder %s272, %s273
      %p282 = scmp.eq.s32.totalorder %s37, 0
      %p283 = por %p281, %p282
      %p284 = scmp.ne.s32.totalorder %s272, %s273
      %p285 = scmp.eq.s32.totalorder %s38, 1
      %p286 = por %p284, %p285
      %p288 = scmp.ne.s32.totalorder %s273, %s287
      %p289 = scmp.eq.s32.totalorder %s38, 0
      %p290 = por %p288, %p289
      %s292 = sadd.s32 %s291, 1
      %p295 = scmp.eq.s32.totalorder %s32, 1
      %p296 = scmp.ne.s32.totalorder %s291, %s293
      %p297 = scmp.eq.s32.totalorder %s32, 0
      %p298 = por %p296, %p297
      %p299 = scmp.ne.s32.totalorder %s291, %s293
      %p300 = scmp.eq.s32.totalorder %s37, 1
      %p301 = por %p299, %p300
      %p302 = scmp.ne.s32.totalorder %s293, %s294
      %p303 = scmp.eq.s32.totalorder %s37, 0
      %p304 = por %p302, %p303
      %p305 = scmp.ne.s32.totalorder %s293, %s294
      %p306 = scmp.eq.s32.totalorder %s38, 1
      %p307 = por %p305, %p306
      %p309 = scmp.ne.s32.totalorder %s294, %s308
      %p310 = scmp.eq.s32.totalorder %s38, 0
      %p311 = por %p309, %p310
      %s312 = ssub.s32 %s32, %s39
      %p313 = scmp.eq.s32.totalorder %s312, 0
      %s315 = sadd.s32 %s314, 1
      %s316 = scalar_select %p313, %s314, %s315
      %p319 = pneg %p313
      %p320 = scmp.eq.s32.totalorder %s32, 1
      %p321 = por %p319, %p320
      %p322 = scmp.ne.s32.totalorder %s314, %s317
      %p323 = scmp.eq.s32.totalorder %s32, 0
      %p324 = por %p322, %p323
      %p325 = scmp.ne.s32.totalorder %s314, %s317
      %p326 = scmp.eq.s32.totalorder %s37, 1
      %p327 = por %p325, %p326
      %p328 = scmp.ne.s32.totalorder %s317, %s318
      %p329 = scmp.eq.s32.totalorder %s37, 0
      %p330 = por %p328, %p329
      %p331 = scmp.ne.s32.totalorder %s317, %s318
      %p332 = scmp.eq.s32.totalorder %s38, 1
      %p333 = por %p331, %p332
      %p335 = scmp.ne.s32.totalorder %s318, %s334
      %p336 = scmp.eq.s32.totalorder %s38, 0
      %p337 = por %p335, %p336
      %p338 = scmp.le.s32.totalorder 1, %s32
      %p339 = scmp.lt.s32.totalorder %s32, 3
      %p340 = pnand %p338, %p339
      %p341 = pneg %p340
      // Predicated region
      $region9: #{tpu_custom_call.1} parent=5 // pred_check
        _
      $region10: #{tpu_custom_call.1} parent=5 // pred_check_branch
        %343 = sbr.rel (%p340) target = $region12
      $region11: #{tpu_custom_call.1} parent=5 // pred_region
        %s344 = ssub.s32 %s32, 1
        // Predicated region
        $region13: #{tpu_custom_call.1} parent=11 // pred_check
          %p345 = pneg %p157
        $region14: #{tpu_custom_call.1} parent=11 // pred_check_branch
          %347 = sbr.rel (%p345) target = $region16
        $region15: #{tpu_custom_call.1} parent=11 // pred_region
          %s349 = ssub.s32 2048, 2048
          %350 = vsyncadd [#allocation9], %s349
          %s351 = sshll.u32 [#allocation10], 4
          %s352 = int_to_ptr.vmem [resolvable:$true] %s351
          %357 = dma.hbm_to_vmem [thread:$0]  %s4, 2048, %s352, [#allocation9], 64, 64, 4
        $region16: #{tpu_custom_call.1} parent=11 // pred_fallthru
          _
        // Predicated region
        $region17: #{tpu_custom_call.1} parent=11 // pred_check
          %p358 = pneg %p178
        $region18: #{tpu_custom_call.1} parent=11 // pred_check_branch
          %360 = sbr.rel (%p358) target = $region20
        $region19: #{tpu_custom_call.1} parent=11 // pred_region
          _
        $region20: #{tpu_custom_call.1} parent=11 // pred_fallthru
          _
        // Predicated region
        $region21: #{tpu_custom_call.1} parent=11 // pred_check
          %p361 = pneg %p199
        $region22: #{tpu_custom_call.1} parent=11 // pred_check_branch
          %363 = sbr.rel (%p361) target = $region24
        $region23: #{tpu_custom_call.1} parent=11 // pred_region
          %s365 = ssub.s32 1024, 1024
          %366 = vsyncadd [#allocation12], %s365
          %s367 = sshll.u32 [#allocation11], 4
          %s368 = int_to_ptr.vmem [resolvable:$true] %s367
          %373 = dma.hbm_to_vmem [thread:$0]  %s6, 1024, %s368, [#allocation12], 64, 64, 4
        $region24: #{tpu_custom_call.1} parent=11 // pred_fallthru
          _
        // Predicated region
        $region25: #{tpu_custom_call.1} parent=11 // pred_check
          %p374 = pneg %p220
        $region26: #{tpu_custom_call.1} parent=11 // pred_check_branch
          %376 = sbr.rel (%p374) target = $region28
        $region27: #{tpu_custom_call.1} parent=11 // pred_region
          _
        $region28: #{tpu_custom_call.1} parent=11 // pred_fallthru
          _
        // Predicated region
        $region29: #{tpu_custom_call.1} parent=11 // pred_check
          %p377 = pneg %p241
        $region30: #{tpu_custom_call.1} parent=11 // pred_check_branch
          %379 = sbr.rel (%p377) target = $region32
        $region31: #{tpu_custom_call.1} parent=11 // pred_region
          %s381 = ssub.s32 1024, 1024
          %382 = vsyncadd [#allocation12], %s381
          %s383 = sshll.u32 [#allocation13], 4
          %s384 = int_to_ptr.vmem [resolvable:$true] %s383
          %389 = dma.hbm_to_vmem [thread:$0]  %s8, 1024, %s384, [#allocation12], 64, 64, 4
        $region32: #{tpu_custom_call.1} parent=11 // pred_fallthru
          _
        // Predicated region
        $region33: #{tpu_custom_call.1} parent=11 // pred_check
          %p390 = pneg %p262
        $region34: #{tpu_custom_call.1} parent=11 // pred_check_branch
          %392 = sbr.rel (%p390) target = $region36
        $region35: #{tpu_custom_call.1} parent=11 // pred_region
          _
        $region36: #{tpu_custom_call.1} parent=11 // pred_fallthru
          _
        // Predicated region
        $region37: #{tpu_custom_call.1} parent=11 // pred_check
          %p393 = pneg %p283
        $region38: #{tpu_custom_call.1} parent=11 // pred_check_branch
          %395 = sbr.rel (%p393) target = $region40
        $region39: #{tpu_custom_call.1} parent=11 // pred_region
          %s397 = ssub.s32 1024, 1024
          %398 = vsyncadd [#allocation15], %s397
          %s399 = sshll.u32 [#allocation14], 4
          %s400 = int_to_ptr.vmem [resolvable:$true] %s399
          %405 = dma.hbm_to_vmem [thread:$0]  %s10, 1024, %s400, [#allocation15], 64, 64, 4
        $region40: #{tpu_custom_call.1} parent=11 // pred_fallthru
          _
        // Predicated region
        $region41: #{tpu_custom_call.1} parent=11 // pred_check
          %p406 = pneg %p304
        $region42: #{tpu_custom_call.1} parent=11 // pred_check_branch
          %408 = sbr.rel (%p406) target = $region44
        $region43: #{tpu_custom_call.1} parent=11 // pred_region
          _
        $region44: #{tpu_custom_call.1} parent=11 // pred_fallthru
          _
      $region12: #{tpu_custom_call.1} parent=5 // pred_fallthru
        _
      %p409 = scmp.lt.s32.totalorder %s32, 2
      // Predicated region
      $region45: #{tpu_custom_call.1} parent=5 // pred_check
        %p410 = pneg %p409
      $region46: #{tpu_custom_call.1} parent=5 // pred_check_branch
        %412 = sbr.rel (%p410) target = $region48
      $region47: #{tpu_custom_call.1} parent=5 // pred_region
        // Predicated region
        $region49: #{tpu_custom_call.1} parent=47 // pred_check
          %p413 = pneg %p52
        $region50: #{tpu_custom_call.1} parent=47 // pred_check_branch
          %415 = sbr.rel (%p413) target = $region52
        $region51: #{tpu_custom_call.1} parent=47 // pred_region
          %s416 = sand.u32 %s42, 1
          %s417 = scalar_lea.sflag [#allocation3], %s416
          %s418 = sand.u32 %s42, 1
          %s419 = smul.addr %s418, 256
          %s420 = scalar_lea.vmem [#allocation2], %s419
          %s421 = smul.u32 16, %s32
          %s423 = ssub.s32 4096, 4096
          %424 = vsyncadd %s417, %s423
          %s425 = smul.addr %s421, 2
          %s426 = smul.addr %s425, 128
          %s427 = scalar_lea.hbm %s0, %s426
          %s428 = sshll.u32 %s420, 4
          %s429 = int_to_ptr.vmem [resolvable:$true] %s428
          %434 = dma.hbm_to_vmem [thread:$0]  %s427, 4096, %s429, %s417, 256, 256, 16
        $region52: #{tpu_custom_call.1} parent=47 // pred_fallthru
          _
        // Predicated region
        $region53: #{tpu_custom_call.1} parent=47 // pred_check
          %p435 = pneg %p78
        $region54: #{tpu_custom_call.1} parent=47 // pred_check_branch
          %437 = sbr.rel (%p435) target = $region56
        $region55: #{tpu_custom_call.1} parent=47 // pred_region
          %s438 = sand.u32 %s32, 1
          %s439 = scalar_lea.sflag [#allocation6], %s438
          %s440 = sand.u32 %s68, 1
          %s441 = smul.addr %s440, 128
          %s442 = scalar_lea.vmem [#allocation5], %s441
          %s443 = smul.u32 16, %s32
          %s445 = ssub.s32 2048, 2048
          %446 = vsyncadd %s439, %s445
          %s447 = smul.addr %s443, 128
          %s448 = scalar_lea.hbm %s1, %s447
          %s449 = sshll.u32 %s442, 4
          %s450 = int_to_ptr.vmem [resolvable:$true] %s449
          %455 = dma.hbm_to_vmem [thread:$0]  %s448, 2048, %s450, %s439, 128, 128, 8
        $region56: #{tpu_custom_call.1} parent=47 // pred_fallthru
          _
        // Predicated region
        $region57: #{tpu_custom_call.1} parent=47 // pred_check
          %p456 = pneg %p104
        $region58: #{tpu_custom_call.1} parent=47 // pred_check_branch
          %458 = sbr.rel (%p456) target = $region60
        $region59: #{tpu_custom_call.1} parent=47 // pred_region
          %s459 = sand.u32 %s32, 1
          %s460 = scalar_lea.sflag [#allocation6], %s459
          %s461 = sand.u32 %s94, 1
          %s462 = smul.addr %s461, 128
          %s463 = scalar_lea.vmem [#allocation7], %s462
          %s464 = smul.u32 16, %s32
          %s466 = ssub.s32 2048, 2048
          %467 = vsyncadd %s460, %s466
          %s468 = smul.addr %s464, 128
          %s469 = scalar_lea.hbm %s2, %s468
          %s470 = sshll.u32 %s463, 4
          %s471 = int_to_ptr.vmem [resolvable:$true] %s470
          %476 = dma.hbm_to_vmem [thread:$0]  %s469, 2048, %s471, %s460, 128, 128, 8
        $region60: #{tpu_custom_call.1} parent=47 // pred_fallthru
          _
        // Predicated region
        $region61: #{tpu_custom_call.1} parent=47 // pred_check
          %p477 = pneg %p130
        $region62: #{tpu_custom_call.1} parent=47 // pred_check_branch
          %479 = sbr.rel (%p477) target = $region64
        $region63: #{tpu_custom_call.1} parent=47 // pred_region
          %s480 = sand.u32 %s32, 1
          %s481 = scalar_lea.sflag [#allocation9], %s480
          %s482 = sand.u32 %s120, 1
          %s483 = smul.addr %s482, 128
          %s484 = scalar_lea.vmem [#allocation8], %s483
          %s485 = smul.u32 16, %s32
          %s487 = ssub.s32 2048, 2048
          %488 = vsyncadd %s481, %s487
          %s489 = smul.addr %s485, 128
          %s490 = scalar_lea.hbm %s3, %s489
          %s491 = sshll.u32 %s484, 4
          %s492 = int_to_ptr.vmem [resolvable:$true] %s491
          %497 = dma.hbm_to_vmem [thread:$0]  %s490, 2048, %s492, %s481, 128, 128, 8
        $region64: #{tpu_custom_call.1} parent=47 // pred_fallthru
          _
      $region48: #{tpu_custom_call.1} parent=5 // pred_fallthru
        _
      %p498 = scmp.le.s32.totalorder 1, %s32
      %p499 = scmp.lt.s32.totalorder %s32, 3
      %p500 = pnand %p498, %p499
      %p501 = pneg %p500
      // Predicated region
      $region65: #{tpu_custom_call.1} parent=5 // pred_check
        _
      $region66: #{tpu_custom_call.1} parent=5 // pred_check_branch
        %503 = sbr.rel (%p500) target = $region68
      $region67: #{tpu_custom_call.1} parent=5 // pred_region
        %s504 = ssub.s32 %s32, 1
        %s505 = sand.u32 %s45, 1
        %s506 = scalar_lea.sflag [#allocation3], %s505
        %s507 = sand.u32 %s45, 1
        %s508 = smul.addr %s507, 256
        %s509 = scalar_lea.vmem [#allocation2], %s508
        // Predicated region
        $region69: #{tpu_custom_call.1} parent=67 // pred_check
          %p510 = pneg %p58
        $region70: #{tpu_custom_call.1} parent=67 // pred_check_branch
          %512 = sbr.rel (%p510) target = $region72
        $region71: #{tpu_custom_call.1} parent=67 // pred_region
          %513 = dma.done %s506, 4096
        $region72: #{tpu_custom_call.1} parent=67 // pred_fallthru
          _
        %s514 = sand.u32 %s37, 1
        %s515 = scalar_lea.sflag [#allocation6], %s514
        %s516 = sand.u32 %s71, 1
        %s517 = smul.addr %s516, 128
        %s518 = scalar_lea.vmem [#allocation5], %s517
        // Predicated region
        $region73: #{tpu_custom_call.1} parent=67 // pred_check
          %p519 = pneg %p84
        $region74: #{tpu_custom_call.1} parent=67 // pred_check_branch
          %521 = sbr.rel (%p519) target = $region76
        $region75: #{tpu_custom_call.1} parent=67 // pred_region
          %522 = dma.done %s515, 2048
        $region76: #{tpu_custom_call.1} parent=67 // pred_fallthru
          _
        %s523 = sand.u32 %s37, 1
        %s524 = scalar_lea.sflag [#allocation6], %s523
        %s525 = sand.u32 %s97, 1
        %s526 = smul.addr %s525, 128
        %s527 = scalar_lea.vmem [#allocation7], %s526
        // Predicated region
        $region77: #{tpu_custom_call.1} parent=67 // pred_check
          %p528 = pneg %p110
        $region78: #{tpu_custom_call.1} parent=67 // pred_check_branch
          %530 = sbr.rel (%p528) target = $region80
        $region79: #{tpu_custom_call.1} parent=67 // pred_region
          %531 = dma.done %s524, 2048
        $region80: #{tpu_custom_call.1} parent=67 // pred_fallthru
          _
        %s532 = sand.u32 %s37, 1
        %s533 = scalar_lea.sflag [#allocation9], %s532
        %s534 = sand.u32 %s123, 1
        %s535 = smul.addr %s534, 128
        %s536 = scalar_lea.vmem [#allocation8], %s535
        // Predicated region
        $region81: #{tpu_custom_call.1} parent=67 // pred_check
          %p537 = pneg %p136
        $region82: #{tpu_custom_call.1} parent=67 // pred_check_branch
          %539 = sbr.rel (%p537) target = $region84
        $region83: #{tpu_custom_call.1} parent=67 // pred_region
          %540 = dma.done %s533, 2048
        $region84: #{tpu_custom_call.1} parent=67 // pred_fallthru
          _
        // Predicated region
        $region85: #{tpu_custom_call.1} parent=67 // pred_check
          %p541 = pneg %p157
        $region86: #{tpu_custom_call.1} parent=67 // pred_check_branch
          %543 = sbr.rel (%p541) target = $region88
        $region87: #{tpu_custom_call.1} parent=67 // pred_region
          %544 = dma.done [#allocation9], 2048
        $region88: #{tpu_custom_call.1} parent=67 // pred_fallthru
          _
        // Predicated region
        $region89: #{tpu_custom_call.1} parent=67 // pred_check
          %p545 = pneg %p199
        $region90: #{tpu_custom_call.1} parent=67 // pred_check_branch
          %547 = sbr.rel (%p545) target = $region92
        $region91: #{tpu_custom_call.1} parent=67 // pred_region
          %548 = dma.done [#allocation12], 1024
        $region92: #{tpu_custom_call.1} parent=67 // pred_fallthru
          _
        // Predicated region
        $region93: #{tpu_custom_call.1} parent=67 // pred_check
          %p549 = pneg %p241
        $region94: #{tpu_custom_call.1} parent=67 // pred_check_branch
          %551 = sbr.rel (%p549) target = $region96
        $region95: #{tpu_custom_call.1} parent=67 // pred_region
          %552 = dma.done [#allocation12], 1024
        $region96: #{tpu_custom_call.1} parent=67 // pred_fallthru
          _
        // Predicated region
        $region97: #{tpu_custom_call.1} parent=67 // pred_check
          %p553 = pneg %p283
        $region98: #{tpu_custom_call.1} parent=67 // pred_check_branch
          %555 = sbr.rel (%p553) target = $region100
        $region99: #{tpu_custom_call.1} parent=67 // pred_region
          %556 = dma.done [#allocation15], 1024
        $region100: #{tpu_custom_call.1} parent=67 // pred_fallthru
          _
        %s557 = sand.u32 %s45, 1
        %s558 = scalar_lea.sflag [#allocation3], %s557
        %s559 = sand.u32 %s45, 1
        %s560 = smul.addr %s559, 256
        %s561 = scalar_lea.vmem [#allocation2], %s560
        %p562 = pneg %p58
        %p563 = pneg %p55
        %s564 = sand.u32 %s37, 1
        %s565 = scalar_lea.sflag [#allocation6], %s564
        %s566 = sand.u32 %s71, 1
        %s567 = smul.addr %s566, 128
        %s568 = scalar_lea.vmem [#allocation5], %s567
        %p569 = pneg %p84
        %p570 = pneg %p81
        %s571 = sand.u32 %s37, 1
        %s572 = scalar_lea.sflag [#allocation6], %s571
        %s573 = sand.u32 %s97, 1
        %s574 = smul.addr %s573, 128
        %s575 = scalar_lea.vmem [#allocation7], %s574
        %p576 = pneg %p110
        %p577 = pneg %p107
        %s578 = sand.u32 %s37, 1
        %s579 = scalar_lea.sflag [#allocation9], %s578
        %s580 = sand.u32 %s123, 1
        %s581 = smul.addr %s580, 128
        %s582 = scalar_lea.vmem [#allocation8], %s581
        %p583 = pneg %p136
        %p584 = pneg %p133
        %p585 = pneg %p157
        %p586 = pneg %p154
        %p587 = pneg %p178
        %p588 = pneg %p175
        %p589 = pneg %p199
        %p590 = pneg %p196
        %p591 = pneg %p220
        %p592 = pneg %p217
        %p593 = pneg %p241
        %p594 = pneg %p238
        %p595 = pneg %p262
        %p596 = pneg %p259
        %p597 = pneg %p283
        %p598 = pneg %p280
        %p599 = pneg %p304
        %p600 = pneg %p301
        %p601 = pneg %p330
        %p602 = pneg %p327
        %s603 = sand.u32 %s317, 1
        %s604 = scalar_lea.sflag [#allocation4], %s603
        %s605 = sand.u32 %s317, 1
        %s606 = smul.addr %s605, 128
        %s607 = scalar_lea.vmem [#allocation16], %s606
        %s608 = smul.u32 16, %s37
        %s609 = smul.u32 16, %s37
        %s610 = smul.u32 16, %s37
        %s611 = smul.u32 16, %s37
        %s612 = smul.u32 16, %s37
        %v614 = vld [vmem:[%s509] sm:$0xff]
        %v615 = vld [vmem:[%s509 + $0x8] sm:$0xff]
        %v616 = vld [vmem:[%s509 + $0x10] sm:$0xff]
        %v617 = vld [vmem:[%s509 + $0x18] sm:$0xff]
        %v618 = vld [vmem:[%s509 + $0x20] sm:$0xff]
        %v619 = vld [vmem:[%s509 + $0x28] sm:$0xff]
        %v620 = vld [vmem:[%s509 + $0x30] sm:$0xff]
        %v621 = vld [vmem:[%s509 + $0x38] sm:$0xff]
        %v622 = vld [vmem:[%s509 + $0x40] sm:$0xff]
        %v623 = vld [vmem:[%s509 + $0x48] sm:$0xff]
        %v624 = vld [vmem:[%s509 + $0x50] sm:$0xff]
        %v625 = vld [vmem:[%s509 + $0x58] sm:$0xff]
        %v626 = vld [vmem:[%s509 + $0x60] sm:$0xff]
        %v627 = vld [vmem:[%s509 + $0x68] sm:$0xff]
        %v628 = vld [vmem:[%s509 + $0x70] sm:$0xff]
        %v629 = vld [vmem:[%s509 + $0x78] sm:$0xff]
        %v630 = vld [vmem:[%s509 + $0x80] sm:$0xff]
        %v631 = vld [vmem:[%s509 + $0x88] sm:$0xff]
        %v632 = vld [vmem:[%s509 + $0x90] sm:$0xff]
        %v633 = vld [vmem:[%s509 + $0x98] sm:$0xff]
        %v634 = vld [vmem:[%s509 + $0xa0] sm:$0xff]
        %v635 = vld [vmem:[%s509 + $0xa8] sm:$0xff]
        %v636 = vld [vmem:[%s509 + $0xb0] sm:$0xff]
        %v637 = vld [vmem:[%s509 + $0xb8] sm:$0xff]
        %v638 = vld [vmem:[%s509 + $0xc0] sm:$0xff]
        %v639 = vld [vmem:[%s509 + $0xc8] sm:$0xff]
        %v640 = vld [vmem:[%s509 + $0xd0] sm:$0xff]
        %v641 = vld [vmem:[%s509 + $0xd8] sm:$0xff]
        %v642 = vld [vmem:[%s509 + $0xe0] sm:$0xff]
        %v643 = vld [vmem:[%s509 + $0xe8] sm:$0xff]
        %v644 = vld [vmem:[%s509 + $0xf0] sm:$0xff]
        %v645 = vld [vmem:[%s509 + $0xf8] sm:$0xff]
        %v646 = vpack.c.bf16 %v616, %v614
        %v647 = vpack.c.bf16 %v617, %v615
        %v648 = vpack.c.bf16 %v620, %v618
        %v649 = vpack.c.bf16 %v621, %v619
        %v650 = vpack.c.bf16 %v624, %v622
        %v651 = vpack.c.bf16 %v625, %v623
        %v652 = vpack.c.bf16 %v628, %v626
        %v653 = vpack.c.bf16 %v629, %v627
        %v654 = vpack.c.bf16 %v632, %v630
        %v655 = vpack.c.bf16 %v633, %v631
        %v656 = vpack.c.bf16 %v636, %v634
        %v657 = vpack.c.bf16 %v637, %v635
        %v658 = vpack.c.bf16 %v640, %v638
        %v659 = vpack.c.bf16 %v641, %v639
        %v660 = vpack.c.bf16 %v644, %v642
        %v661 = vpack.c.bf16 %v645, %v643
        %v662 = vld [vmem:[#allocation10] sm:$0xf]
        %v663 = vld [vmem:[#allocation10 + $0x4] sm:$0xf]
        %v664 = vld [vmem:[#allocation10 + $0x8] sm:$0xf]
        %v665 = vld [vmem:[#allocation10 + $0xc] sm:$0xf]
        %v666 = vld [vmem:[#allocation10 + $0x10] sm:$0xf]
        %v667 = vld [vmem:[#allocation10 + $0x14] sm:$0xf]
        %v668 = vld [vmem:[#allocation10 + $0x18] sm:$0xf]
        %v669 = vld [vmem:[#allocation10 + $0x1c] sm:$0xf]
        %v670 = vld [vmem:[#allocation10 + $0x20] sm:$0xf]
        %v671 = vld [vmem:[#allocation10 + $0x24] sm:$0xf]
        %v672 = vld [vmem:[#allocation10 + $0x28] sm:$0xf]
        %v673 = vld [vmem:[#allocation10 + $0x2c] sm:$0xf]
        %v674 = vld [vmem:[#allocation10 + $0x30] sm:$0xf]
        %v675 = vld [vmem:[#allocation10 + $0x34] sm:$0xf]
        %v676 = vld [vmem:[#allocation10 + $0x38] sm:$0xf]
        %v677 = vld [vmem:[#allocation10 + $0x3c] sm:$0xf]
        %v678 = vld [vmem:[#allocation10 + $0x40] sm:$0xf]
        %v679 = vld [vmem:[#allocation10 + $0x44] sm:$0xf]
        %v680 = vld [vmem:[#allocation10 + $0x48] sm:$0xf]
        %v681 = vld [vmem:[#allocation10 + $0x4c] sm:$0xf]
        %v682 = vld [vmem:[#allocation10 + $0x50] sm:$0xf]
        %v683 = vld [vmem:[#allocation10 + $0x54] sm:$0xf]
        %v684 = vld [vmem:[#allocation10 + $0x58] sm:$0xf]
        %v685 = vld [vmem:[#allocation10 + $0x5c] sm:$0xf]
        %v686 = vld [vmem:[#allocation10 + $0x60] sm:$0xf]
        %v687 = vld [vmem:[#allocation10 + $0x64] sm:$0xf]
        %v688 = vld [vmem:[#allocation10 + $0x68] sm:$0xf]
        %v689 = vld [vmem:[#allocation10 + $0x6c] sm:$0xf]
        %v690 = vld [vmem:[#allocation10 + $0x70] sm:$0xf]
        %v691 = vld [vmem:[#allocation10 + $0x74] sm:$0xf]
        %v692 = vld [vmem:[#allocation10 + $0x78] sm:$0xf]
        %v693 = vld [vmem:[#allocation10 + $0x7c] sm:$0xf]
        %v694 = vld [vmem:[%s5] sm:$0x1]
        %v696 = vlaneseq
        %v697 = vshrl.u32 %v696, 7
        %v698 = vsub.s32 0, %v697
        %v699 = vrot.slane %v694, %v698
        %v733 = vunpack.c.l.b16 %v662
        %v734 = vunpack.c.l.b16 %v663
        %v735 = vunpack.c.l.b16 %v664
        %v736 = vunpack.c.l.b16 %v665
        %v737 = vunpack.c.l.b16 %v666
        %v738 = vunpack.c.l.b16 %v667
        %v739 = vunpack.c.l.b16 %v668
        %v740 = vunpack.c.l.b16 %v669
        %v741 = vunpack.c.l.b16 %v670
        %v742 = vunpack.c.l.b16 %v671
        %v743 = vunpack.c.l.b16 %v672
        %v744 = vunpack.c.l.b16 %v673
        %v745 = vunpack.c.l.b16 %v674
        %v746 = vunpack.c.l.b16 %v675
        %v747 = vunpack.c.l.b16 %v676
        %v748 = vunpack.c.l.b16 %v677
        %v749 = vunpack.c.l.b16 %v678
        %v750 = vunpack.c.l.b16 %v679
        %v751 = vunpack.c.l.b16 %v680
        %v752 = vunpack.c.l.b16 %v681
        %v753 = vunpack.c.l.b16 %v682
        %v754 = vunpack.c.l.b16 %v683
        %v755 = vunpack.c.l.b16 %v684
        %v756 = vunpack.c.l.b16 %v685
        %v757 = vunpack.c.l.b16 %v686
        %v758 = vunpack.c.l.b16 %v687
        %v759 = vunpack.c.l.b16 %v688
        %v760 = vunpack.c.l.b16 %v689
        %v761 = vunpack.c.l.b16 %v690
        %v762 = vunpack.c.l.b16 %v691
        %v763 = vunpack.c.l.b16 %v692
        %v764 = vunpack.c.l.b16 %v693
        %v765 = vpack.c.b16 %v734, %v733
        %v766 = vpack.c.b16 %v736, %v735
        %v767 = vpack.c.b16 %v738, %v737
        %v768 = vpack.c.b16 %v740, %v739
        %v769 = vpack.c.b16 %v742, %v741
        %v770 = vpack.c.b16 %v744, %v743
        %v771 = vpack.c.b16 %v746, %v745
        %v772 = vpack.c.b16 %v748, %v747
        %v773 = vpack.c.b16 %v750, %v749
        %v774 = vpack.c.b16 %v752, %v751
        %v775 = vpack.c.b16 %v754, %v753
        %v776 = vpack.c.b16 %v756, %v755
        %v777 = vpack.c.b16 %v758, %v757
        %v778 = vpack.c.b16 %v760, %v759
        %v779 = vpack.c.b16 %v762, %v761
        %v780 = vpack.c.b16 %v764, %v763
        %797 = vmatprep.subr.bf16.mxu0 0
        %798 = vmatpush1.bf16.msra.mxu0 %v765
        %799 = vmatprep.subr.bf16.mxu0 0
        %800 = vmatpush1.bf16.msra.mxu0 %v766
        %801 = vmatprep.subr.bf16.mxu0 0
        %802 = vmatpush1.bf16.msra.mxu0 %v767
        %803 = vmatprep.subr.bf16.mxu0 0
        %804 = vmatpush1.bf16.msra.mxu0 %v768
        %805 = vmatprep.subr.bf16.mxu0 0
        %806 = vmatpush1.bf16.msra.mxu0 %v769
        %807 = vmatprep.subr.bf16.mxu0 0
        %808 = vmatpush1.bf16.msra.mxu0 %v770
        %809 = vmatprep.subr.bf16.mxu0 0
        %810 = vmatpush1.bf16.msra.mxu0 %v771
        %811 = vmatprep.subr.bf16.mxu0 0
        %812 = vmatpush1.bf16.msra.mxu0 %v772
        %813 = vmatprep.subr.bf16.mxu0 0
        %814 = vmatpush1.bf16.msra.mxu0 %v773
        %815 = vmatprep.subr.bf16.mxu0 0
        %816 = vmatpush1.bf16.msra.mxu0 %v774
        %817 = vmatprep.subr.bf16.mxu0 0
        %818 = vmatpush1.bf16.msra.mxu0 %v775
        %819 = vmatprep.subr.bf16.mxu0 0
        %820 = vmatpush1.bf16.msra.mxu0 %v776
        %821 = vmatprep.subr.bf16.mxu0 0
        %822 = vmatpush1.bf16.msra.mxu0 %v777
        %823 = vmatprep.subr.bf16.mxu0 0
        %824 = vmatpush1.bf16.msra.mxu0 %v778
        %825 = vmatprep.subr.bf16.mxu0 0
        %826 = vmatpush1.bf16.msra.mxu0 %v779
        %827 = vmatprep.subr.bf16.mxu0 0
        %828 = vmatpush1.bf16.msra.mxu0 %v780
        %829 = vmatprep.mubr.bf16.mxu0 %v647
        %830 = vmatmul.mubr.bf16.gmra.mrb[0].mxu0 %v646
        %v831 = vpop.f32.mrb[0].mxu0
        %v832 = vadd.f32 %v699, %v831
        %v833 = vpop.f32.mrb[0].mxu0
        %v834 = vpop.f32.mrb[0].mxu0
        %v835 = vadd.f32 %v699, %v834
        %v836 = vpop.f32.mrb[0].mxu0
        %837 = vmatprep.mubr.bf16.mxu0 %v649
        %838 = vmatmul.mubr.bf16.gmra.mrb[0].mxu0 %v648
        %v839 = vpop.f32.mrb[0].mxu0
        %v840 = vadd.f32 %v699, %v839
        %v841 = vpop.f32.mrb[0].mxu0
        %v842 = vpop.f32.mrb[0].mxu0
        %v843 = vadd.f32 %v699, %v842
        %v844 = vpop.f32.mrb[0].mxu0
        %845 = vmatprep.mubr.bf16.mxu0 %v651
        %846 = vmatmul.mubr.bf16.gmra.mrb[0].mxu0 %v650
        %v847 = vpop.f32.mrb[0].mxu0
        %v848 = vadd.f32 %v699, %v847
        %v849 = vpop.f32.mrb[0].mxu0
        %v850 = vpop.f32.mrb[0].mxu0
        %v851 = vadd.f32 %v699, %v850
        %v852 = vpop.f32.mrb[0].mxu0
        %853 = vmatprep.mubr.bf16.mxu0 %v653
        %854 = vmatmul.mubr.bf16.gmra.mrb[0].mxu0 %v652
        %v855 = vpop.f32.mrb[0].mxu0
        %v856 = vadd.f32 %v699, %v855
        %v857 = vpop.f32.mrb[0].mxu0
        %v858 = vpop.f32.mrb[0].mxu0
        %v859 = vadd.f32 %v699, %v858
        %v860 = vpop.f32.mrb[0].mxu0
        %861 = vmatprep.mubr.bf16.mxu0 %v655
        %862 = vmatmul.mubr.bf16.gmra.mrb[0].mxu0 %v654
        %v863 = vpop.f32.mrb[0].mxu0
        %v864 = vadd.f32 %v699, %v863
        %v865 = vpop.f32.mrb[0].mxu0
        %v866 = vpop.f32.mrb[0].mxu0
        %v867 = vadd.f32 %v699, %v866
        %v868 = vpop.f32.mrb[0].mxu0
        %869 = vmatprep.mubr.bf16.mxu0 %v657
        %870 = vmatmul.mubr.bf16.gmra.mrb[0].mxu0 %v656
        %v871 = vpop.f32.mrb[0].mxu0
        %v872 = vadd.f32 %v699, %v871
        %v873 = vpop.f32.mrb[0].mxu0
        %v874 = vpop.f32.mrb[0].mxu0
        %v875 = vadd.f32 %v699, %v874
        %v876 = vpop.f32.mrb[0].mxu0
        %877 = vmatprep.mubr.bf16.mxu0 %v659
        %878 = vmatmul.mubr.bf16.gmra.mrb[0].mxu0 %v658
        %v879 = vpop.f32.mrb[0].mxu0
        %v880 = vadd.f32 %v699, %v879
        %v881 = vpop.f32.mrb[0].mxu0
        %v882 = vpop.f32.mrb[0].mxu0
        %v883 = vadd.f32 %v699, %v882
        %v884 = vpop.f32.mrb[0].mxu0
        %885 = vmatprep.mubr.bf16.mxu0 %v661
        %886 = vmatmul.mubr.bf16.gmra.mrb[0].mxu0 %v660
        %v887 = vpop.f32.mrb[0].mxu0
        %v888 = vadd.f32 %v699, %v887
        %v889 = vpop.f32.mrb[0].mxu0
        %v890 = vpop.f32.mrb[0].mxu0
        %v891 = vadd.f32 %v699, %v890
        %v892 = vpop.f32.mrb[0].mxu0
        %893 = vdwg.mxu0
        %v894 = vmax.f32 %v832, 0.0
        %v895 = vmax.f32 %v835, 0.0
        %v896 = vmax.f32 %v840, 0.0
        %v897 = vmax.f32 %v843, 0.0
        %v898 = vmax.f32 %v848, 0.0
        %v899 = vmax.f32 %v851, 0.0
        %v900 = vmax.f32 %v856, 0.0
        %v901 = vmax.f32 %v859, 0.0
        %v902 = vmax.f32 %v864, 0.0
        %v903 = vmax.f32 %v867, 0.0
        %v904 = vmax.f32 %v872, 0.0
        %v905 = vmax.f32 %v875, 0.0
        %v906 = vmax.f32 %v880, 0.0
        %v907 = vmax.f32 %v883, 0.0
        %v908 = vmax.f32 %v888, 0.0
        %v909 = vmax.f32 %v891, 0.0
        %v910 = vld [vmem:[%s518] sm:$0xff]
        %v911 = vld [vmem:[%s518 + $0x8] sm:$0xff]
        %v912 = vld [vmem:[%s518 + $0x10] sm:$0xff]
        %v913 = vld [vmem:[%s518 + $0x18] sm:$0xff]
        %v914 = vld [vmem:[%s518 + $0x20] sm:$0xff]
        %v915 = vld [vmem:[%s518 + $0x28] sm:$0xff]
        %v916 = vld [vmem:[%s518 + $0x30] sm:$0xff]
        %v917 = vld [vmem:[%s518 + $0x38] sm:$0xff]
        %v918 = vld [vmem:[%s518 + $0x40] sm:$0xff]
        %v919 = vld [vmem:[%s518 + $0x48] sm:$0xff]
        %v920 = vld [vmem:[%s518 + $0x50] sm:$0xff]
        %v921 = vld [vmem:[%s518 + $0x58] sm:$0xff]
        %v922 = vld [vmem:[%s518 + $0x60] sm:$0xff]
        %v923 = vld [vmem:[%s518 + $0x68] sm:$0xff]
        %v924 = vld [vmem:[%s518 + $0x70] sm:$0xff]
        %v925 = vld [vmem:[%s518 + $0x78] sm:$0xff]
        %v926 = vmul.f32 %v894, %v910
        %v927 = vmul.f32 %v895, %v911
        %v928 = vmul.f32 %v896, %v912
        %v929 = vmul.f32 %v897, %v913
        %v930 = vmul.f32 %v898, %v914
        %v931 = vmul.f32 %v899, %v915
        %v932 = vmul.f32 %v900, %v916
        %v933 = vmul.f32 %v901, %v917
        %v934 = vmul.f32 %v902, %v918
        %v935 = vmul.f32 %v903, %v919
        %v936 = vmul.f32 %v904, %v920
        %v937 = vmul.f32 %v905, %v921
        %v938 = vmul.f32 %v906, %v922
        %v939 = vmul.f32 %v907, %v923
        %v940 = vmul.f32 %v908, %v924
        %v941 = vmul.f32 %v909, %v925
        %v942 = vpack.c.bf16 %v927, %v926
        %v943 = vpack.c.bf16 %v929, %v928
        %v944 = vpack.c.bf16 %v931, %v930
        %v945 = vpack.c.bf16 %v933, %v932
        %v946 = vpack.c.bf16 %v935, %v934
        %v947 = vpack.c.bf16 %v937, %v936
        %v948 = vpack.c.bf16 %v939, %v938
        %v949 = vpack.c.bf16 %v941, %v940
        %v950 = vld [vmem:[#allocation11] sm:$0xf]
        %v951 = vld [vmem:[#allocation11 + $0x4] sm:$0xf]
        %v952 = vld [vmem:[#allocation11 + $0x8] sm:$0xf]
        %v953 = vld [vmem:[#allocation11 + $0xc] sm:$0xf]
        %v954 = vld [vmem:[#allocation11 + $0x10] sm:$0xf]
        %v955 = vld [vmem:[#allocation11 + $0x14] sm:$0xf]
        %v956 = vld [vmem:[#allocation11 + $0x18] sm:$0xf]
        %v957 = vld [vmem:[#allocation11 + $0x1c] sm:$0xf]
        %v958 = vld [vmem:[#allocation11 + $0x20] sm:$0xf]
        %v959 = vld [vmem:[#allocation11 + $0x24] sm:$0xf]
        %v960 = vld [vmem:[#allocation11 + $0x28] sm:$0xf]
        %v961 = vld [vmem:[#allocation11 + $0x2c] sm:$0xf]
        %v962 = vld [vmem:[#allocation11 + $0x30] sm:$0xf]
        %v963 = vld [vmem:[#allocation11 + $0x34] sm:$0xf]
        %v964 = vld [vmem:[#allocation11 + $0x38] sm:$0xf]
        %v965 = vld [vmem:[#allocation11 + $0x3c] sm:$0xf]
        %v966 = vld [vmem:[%s7] sm:$0x1]
        %v968 = vlaneseq
        %v969 = vshrl.u32 %v968, 7
        %v970 = vsub.s32 0, %v969
        %v971 = vrot.slane %v966, %v970
        %v989 = vunpack.c.l.b16 %v950
        %v990 = vunpack.c.l.b16 %v951
        %v991 = vunpack.c.l.b16 %v952
        %v992 = vunpack.c.l.b16 %v953
        %v993 = vunpack.c.l.b16 %v954
        %v994 = vunpack.c.l.b16 %v955
        %v995 = vunpack.c.l.b16 %v956
        %v996 = vunpack.c.l.b16 %v957
        %v997 = vunpack.c.l.b16 %v958
        %v998 = vunpack.c.l.b16 %v959
        %v999 = vunpack.c.l.b16 %v960
        %v1000 = vunpack.c.l.b16 %v961
        %v1001 = vunpack.c.l.b16 %v962
        %v1002 = vunpack.c.l.b16 %v963
        %v1003 = vunpack.c.l.b16 %v964
        %v1004 = vunpack.c.l.b16 %v965
        %v1005 = vpack.c.b16 %v990, %v989
        %v1006 = vpack.c.b16 %v992, %v991
        %v1007 = vpack.c.b16 %v994, %v993
        %v1008 = vpack.c.b16 %v996, %v995
        %v1009 = vpack.c.b16 %v998, %v997
        %v1010 = vpack.c.b16 %v1000, %v999
        %v1011 = vpack.c.b16 %v1002, %v1001
        %v1012 = vpack.c.b16 %v1004, %v1003
        %1021 = vmatprep.subr.bf16.mxu0 0
        %1022 = vmatpush1.bf16.msra.mxu0 %v1005
        %1023 = vmatprep.subr.bf16.mxu0 0
        %1024 = vmatpush1.bf16.msra.mxu0 %v1006
        %1025 = vmatprep.subr.bf16.mxu0 0
        %1026 = vmatpush1.bf16.msra.mxu0 %v1007
        %1027 = vmatprep.subr.bf16.mxu0 0
        %1028 = vmatpush1.bf16.msra.mxu0 %v1008
        %1029 = vmatprep.subr.bf16.mxu0 0
        %1030 = vmatpush1.bf16.msra.mxu0 %v1009
        %1031 = vmatprep.subr.bf16.mxu0 0
        %1032 = vmatpush1.bf16.msra.mxu0 %v1010
        %1033 = vmatprep.subr.bf16.mxu0 0
        %1034 = vmatpush1.bf16.msra.mxu0 %v1011
        %1035 = vmatprep.subr.bf16.mxu0 0
        %1036 = vmatpush1.bf16.msra.mxu0 %v1012
        %1037 = vmatprep.subr.bf16.mxu0 0
        %1038 = vmatpush1.bf16.msra.mxu0 0
        %1039 = vmatprep.subr.bf16.mxu0 0
        %1040 = vmatpush1.bf16.msra.mxu0 0
        %1041 = vmatprep.subr.bf16.mxu0 0
        %1042 = vmatpush1.bf16.msra.mxu0 0
        %1043 = vmatprep.subr.bf16.mxu0 0
        %1044 = vmatpush1.bf16.msra.mxu0 0
        %1045 = vmatprep.subr.bf16.mxu0 0
        %1046 = vmatpush1.bf16.msra.mxu0 0
        %1047 = vmatprep.subr.bf16.mxu0 0
        %1048 = vmatpush1.bf16.msra.mxu0 0
        %1049 = vmatprep.subr.bf16.mxu0 0
        %1050 = vmatpush1.bf16.msra.mxu0 0
        %1051 = vmatprep.subr.bf16.mxu0 0
        %1052 = vmatpush1.bf16.msra.mxu0 0
        %1053 = vmatprep.mubr.bf16.mxu0 0
        %1054 = vmatmul.mubr.bf16.gmra.mrb[0].mxu0 %v942
        %v1055 = vpop.f32.mrb[0].mxu0
        %v1056 = vadd.f32 %v971, %v1055
        %v1057 = vpop.f32.mrb[0].mxu0
        %v1058 = vpop.f32.mrb[0].mxu0
        %v1059 = vadd.f32 %v971, %v1058
        %v1060 = vpop.f32.mrb[0].mxu0
        %1061 = vmatprep.mubr.bf16.mxu0 0
        %1062 = vmatmul.mubr.bf16.gmra.mrb[0].mxu0 %v943
        %v1063 = vpop.f32.mrb[0].mxu0
        %v1064 = vadd.f32 %v971, %v1063
        %v1065 = vpop.f32.mrb[0].mxu0
        %v1066 = vpop.f32.mrb[0].mxu0
        %v1067 = vadd.f32 %v971, %v1066
        %v1068 = vpop.f32.mrb[0].mxu0
        %1069 = vmatprep.mubr.bf16.mxu0 0
        %1070 = vmatmul.mubr.bf16.gmra.mrb[0].mxu0 %v944
        %v1071 = vpop.f32.mrb[0].mxu0
        %v1072 = vadd.f32 %v971, %v1071
        %v1073 = vpop.f32.mrb[0].mxu0
        %v1074 = vpop.f32.mrb[0].mxu0
        %v1075 = vadd.f32 %v971, %v1074
        %v1076 = vpop.f32.mrb[0].mxu0
        %1077 = vmatprep.mubr.bf16.mxu0 0
        %1078 = vmatmul.mubr.bf16.gmra.mrb[0].mxu0 %v945
        %v1079 = vpop.f32.mrb[0].mxu0
        %v1080 = vadd.f32 %v971, %v1079
        %v1081 = vpop.f32.mrb[0].mxu0
        %v1082 = vpop.f32.mrb[0].mxu0
        %v1083 = vadd.f32 %v971, %v1082
        %v1084 = vpop.f32.mrb[0].mxu0
        %1085 = vmatprep.mubr.bf16.mxu0 0
        %1086 = vmatmul.mubr.bf16.gmra.mrb[0].mxu0 %v946
        %v1087 = vpop.f32.mrb[0].mxu0
        %v1088 = vadd.f32 %v971, %v1087
        %v1089 = vpop.f32.mrb[0].mxu0
        %v1090 = vpop.f32.mrb[0].mxu0
        %v1091 = vadd.f32 %v971, %v1090
        %v1092 = vpop.f32.mrb[0].mxu0
        %1093 = vmatprep.mubr.bf16.mxu0 0
        %1094 = vmatmul.mubr.bf16.gmra.mrb[0].mxu0 %v947
        %v1095 = vpop.f32.mrb[0].mxu0
        %v1096 = vadd.f32 %v971, %v1095
        %v1097 = vpop.f32.mrb[0].mxu0
        %v1098 = vpop.f32.mrb[0].mxu0
        %v1099 = vadd.f32 %v971, %v1098
        %v1100 = vpop.f32.mrb[0].mxu0
        %1101 = vmatprep.mubr.bf16.mxu0 0
        %1102 = vmatmul.mubr.bf16.gmra.mrb[0].mxu0 %v948
        %v1103 = vpop.f32.mrb[0].mxu0
        %v1104 = vadd.f32 %v971, %v1103
        %v1105 = vpop.f32.mrb[0].mxu0
        %v1106 = vpop.f32.mrb[0].mxu0
        %v1107 = vadd.f32 %v971, %v1106
        %v1108 = vpop.f32.mrb[0].mxu0
        %1109 = vmatprep.mubr.bf16.mxu0 0
        %1110 = vmatmul.mubr.bf16.gmra.mrb[0].mxu0 %v949
        %v1111 = vpop.f32.mrb[0].mxu0
        %v1112 = vadd.f32 %v971, %v1111
        %v1113 = vpop.f32.mrb[0].mxu0
        %v1114 = vpop.f32.mrb[0].mxu0
        %v1115 = vadd.f32 %v971, %v1114
        %v1116 = vpop.f32.mrb[0].mxu0
        %1117 = vdwg.mxu0
        %v1118 = vmax.f32 %v1056, 0.0
        %v1119 = vmax.f32 %v1059, 0.0
        %v1120 = vmax.f32 %v1064, 0.0
        %v1121 = vmax.f32 %v1067, 0.0
        %v1122 = vmax.f32 %v1072, 0.0
        %v1123 = vmax.f32 %v1075, 0.0
        %v1124 = vmax.f32 %v1080, 0.0
        %v1125 = vmax.f32 %v1083, 0.0
        %v1126 = vmax.f32 %v1088, 0.0
        %v1127 = vmax.f32 %v1091, 0.0
        %v1128 = vmax.f32 %v1096, 0.0
        %v1129 = vmax.f32 %v1099, 0.0
        %v1130 = vmax.f32 %v1104, 0.0
        %v1131 = vmax.f32 %v1107, 0.0
        %v1132 = vmax.f32 %v1112, 0.0
        %v1133 = vmax.f32 %v1115, 0.0
        %v1134 = vld [vmem:[%s527] sm:$0xff]
        %v1135 = vld [vmem:[%s527 + $0x8] sm:$0xff]
        %v1136 = vld [vmem:[%s527 + $0x10] sm:$0xff]
        %v1137 = vld [vmem:[%s527 + $0x18] sm:$0xff]
        %v1138 = vld [vmem:[%s527 + $0x20] sm:$0xff]
        %v1139 = vld [vmem:[%s527 + $0x28] sm:$0xff]
        %v1140 = vld [vmem:[%s527 + $0x30] sm:$0xff]
        %v1141 = vld [vmem:[%s527 + $0x38] sm:$0xff]
        %v1142 = vld [vmem:[%s527 + $0x40] sm:$0xff]
        %v1143 = vld [vmem:[%s527 + $0x48] sm:$0xff]
        %v1144 = vld [vmem:[%s527 + $0x50] sm:$0xff]
        %v1145 = vld [vmem:[%s527 + $0x58] sm:$0xff]
        %v1146 = vld [vmem:[%s527 + $0x60] sm:$0xff]
        %v1147 = vld [vmem:[%s527 + $0x68] sm:$0xff]
        %v1148 = vld [vmem:[%s527 + $0x70] sm:$0xff]
        %v1149 = vld [vmem:[%s527 + $0x78] sm:$0xff]
        %v1150 = vmul.f32 %v1118, %v1134
        %v1151 = vmul.f32 %v1119, %v1135
        %v1152 = vmul.f32 %v1120, %v1136
        %v1153 = vmul.f32 %v1121, %v1137
        %v1154 = vmul.f32 %v1122, %v1138
        %v1155 = vmul.f32 %v1123, %v1139
        %v1156 = vmul.f32 %v1124, %v1140
        %v1157 = vmul.f32 %v1125, %v1141
        %v1158 = vmul.f32 %v1126, %v1142
        %v1159 = vmul.f32 %v1127, %v1143
        %v1160 = vmul.f32 %v1128, %v1144
        %v1161 = vmul.f32 %v1129, %v1145
        %v1162 = vmul.f32 %v1130, %v1146
        %v1163 = vmul.f32 %v1131, %v1147
        %v1164 = vmul.f32 %v1132, %v1148
        %v1165 = vmul.f32 %v1133, %v1149
        %v1166 = vpack.c.bf16 %v1151, %v1150
        %v1167 = vpack.c.bf16 %v1153, %v1152
        %v1168 = vpack.c.bf16 %v1155, %v1154
        %v1169 = vpack.c.bf16 %v1157, %v1156
        %v1170 = vpack.c.bf16 %v1159, %v1158
        %v1171 = vpack.c.bf16 %v1161, %v1160
        %v1172 = vpack.c.bf16 %v1163, %v1162
        %v1173 = vpack.c.bf16 %v1165, %v1164
        %v1174 = vld [vmem:[#allocation13] sm:$0xf]
        %v1175 = vld [vmem:[#allocation13 + $0x4] sm:$0xf]
        %v1176 = vld [vmem:[#allocation13 + $0x8] sm:$0xf]
        %v1177 = vld [vmem:[#allocation13 + $0xc] sm:$0xf]
        %v1178 = vld [vmem:[#allocation13 + $0x10] sm:$0xf]
        %v1179 = vld [vmem:[#allocation13 + $0x14] sm:$0xf]
        %v1180 = vld [vmem:[#allocation13 + $0x18] sm:$0xf]
        %v1181 = vld [vmem:[#allocation13 + $0x1c] sm:$0xf]
        %v1182 = vld [vmem:[#allocation13 + $0x20] sm:$0xf]
        %v1183 = vld [vmem:[#allocation13 + $0x24] sm:$0xf]
        %v1184 = vld [vmem:[#allocation13 + $0x28] sm:$0xf]
        %v1185 = vld [vmem:[#allocation13 + $0x2c] sm:$0xf]
        %v1186 = vld [vmem:[#allocation13 + $0x30] sm:$0xf]
        %v1187 = vld [vmem:[#allocation13 + $0x34] sm:$0xf]
        %v1188 = vld [vmem:[#allocation13 + $0x38] sm:$0xf]
        %v1189 = vld [vmem:[#allocation13 + $0x3c] sm:$0xf]
        %v1190 = vld [vmem:[%s9] sm:$0x1]
        %v1192 = vlaneseq
        %v1193 = vshrl.u32 %v1192, 7
        %v1194 = vsub.s32 0, %v1193
        %v1195 = vrot.slane %v1190, %v1194
        %v1213 = vunpack.c.l.b16 %v1174
        %v1214 = vunpack.c.l.b16 %v1175
        %v1215 = vunpack.c.l.b16 %v1176
        %v1216 = vunpack.c.l.b16 %v1177
        %v1217 = vunpack.c.l.b16 %v1178
        %v1218 = vunpack.c.l.b16 %v1179
        %v1219 = vunpack.c.l.b16 %v1180
        %v1220 = vunpack.c.l.b16 %v1181
        %v1221 = vunpack.c.l.b16 %v1182
        %v1222 = vunpack.c.l.b16 %v1183
        %v1223 = vunpack.c.l.b16 %v1184
        %v1224 = vunpack.c.l.b16 %v1185
        %v1225 = vunpack.c.l.b16 %v1186
        %v1226 = vunpack.c.l.b16 %v1187
        %v1227 = vunpack.c.l.b16 %v1188
        %v1228 = vunpack.c.l.b16 %v1189
        %v1229 = vpack.c.b16 %v1214, %v1213
        %v1230 = vpack.c.b16 %v1216, %v1215
        %v1231 = vpack.c.b16 %v1218, %v1217
        %v1232 = vpack.c.b16 %v1220, %v1219
        %v1233 = vpack.c.b16 %v1222, %v1221
        %v1234 = vpack.c.b16 %v1224, %v1223
        %v1235 = vpack.c.b16 %v1226, %v1225
        %v1236 = vpack.c.b16 %v1228, %v1227
        %1245 = vmatprep.subr.bf16.mxu0 0
        %1246 = vmatpush1.bf16.msra.mxu0 %v1229
        %1247 = vmatprep.subr.bf16.mxu0 0
        %1248 = vmatpush1.bf16.msra.mxu0 %v1230
        %1249 = vmatprep.subr.bf16.mxu0 0
        %1250 = vmatpush1.bf16.msra.mxu0 %v1231
        %1251 = vmatprep.subr.bf16.mxu0 0
        %1252 = vmatpush1.bf16.msra.mxu0 %v1232
        %1253 = vmatprep.subr.bf16.mxu0 0
        %1254 = vmatpush1.bf16.msra.mxu0 %v1233
        %1255 = vmatprep.subr.bf16.mxu0 0
        %1256 = vmatpush1.bf16.msra.mxu0 %v1234
        %1257 = vmatprep.subr.bf16.mxu0 0
        %1258 = vmatpush1.bf16.msra.mxu0 %v1235
        %1259 = vmatprep.subr.bf16.mxu0 0
        %1260 = vmatpush1.bf16.msra.mxu0 %v1236
        %1261 = vmatprep.subr.bf16.mxu0 0
        %1262 = vmatpush1.bf16.msra.mxu0 0
        %1263 = vmatprep.subr.bf16.mxu0 0
        %1264 = vmatpush1.bf16.msra.mxu0 0
        %1265 = vmatprep.subr.bf16.mxu0 0
        %1266 = vmatpush1.bf16.msra.mxu0 0
        %1267 = vmatprep.subr.bf16.mxu0 0
        %1268 = vmatpush1.bf16.msra.mxu0 0
        %1269 = vmatprep.subr.bf16.mxu0 0
        %1270 = vmatpush1.bf16.msra.mxu0 0
        %1271 = vmatprep.subr.bf16.mxu0 0
        %1272 = vmatpush1.bf16.msra.mxu0 0
        %1273 = vmatprep.subr.bf16.mxu0 0
        %1274 = vmatpush1.bf16.msra.mxu0 0
        %1275 = vmatprep.subr.bf16.mxu0 0
        %1276 = vmatpush1.bf16.msra.mxu0 0
        %1277 = vmatprep.mubr.bf16.mxu0 0
        %1278 = vmatmul.mubr.bf16.gmra.mrb[0].mxu0 %v1166
        %v1279 = vpop.f32.mrb[0].mxu0
        %v1280 = vadd.f32 %v1195, %v1279
        %v1281 = vpop.f32.mrb[0].mxu0
        %v1282 = vpop.f32.mrb[0].mxu0
        %v1283 = vadd.f32 %v1195, %v1282
        %v1284 = vpop.f32.mrb[0].mxu0
        %1285 = vmatprep.mubr.bf16.mxu0 0
        %1286 = vmatmul.mubr.bf16.gmra.mrb[0].mxu0 %v1167
        %v1287 = vpop.f32.mrb[0].mxu0
        %v1288 = vadd.f32 %v1195, %v1287
        %v1289 = vpop.f32.mrb[0].mxu0
        %v1290 = vpop.f32.mrb[0].mxu0
        %v1291 = vadd.f32 %v1195, %v1290
        %v1292 = vpop.f32.mrb[0].mxu0
        %1293 = vmatprep.mubr.bf16.mxu0 0
        %1294 = vmatmul.mubr.bf16.gmra.mrb[0].mxu0 %v1168
        %v1295 = vpop.f32.mrb[0].mxu0
        %v1296 = vadd.f32 %v1195, %v1295
        %v1297 = vpop.f32.mrb[0].mxu0
        %v1298 = vpop.f32.mrb[0].mxu0
        %v1299 = vadd.f32 %v1195, %v1298
        %v1300 = vpop.f32.mrb[0].mxu0
        %1301 = vmatprep.mubr.bf16.mxu0 0
        %1302 = vmatmul.mubr.bf16.gmra.mrb[0].mxu0 %v1169
        %v1303 = vpop.f32.mrb[0].mxu0
        %v1304 = vadd.f32 %v1195, %v1303
        %v1305 = vpop.f32.mrb[0].mxu0
        %v1306 = vpop.f32.mrb[0].mxu0
        %v1307 = vadd.f32 %v1195, %v1306
        %v1308 = vpop.f32.mrb[0].mxu0
        %1309 = vmatprep.mubr.bf16.mxu0 0
        %1310 = vmatmul.mubr.bf16.gmra.mrb[0].mxu0 %v1170
        %v1311 = vpop.f32.mrb[0].mxu0
        %v1312 = vadd.f32 %v1195, %v1311
        %v1313 = vpop.f32.mrb[0].mxu0
        %v1314 = vpop.f32.mrb[0].mxu0
        %v1315 = vadd.f32 %v1195, %v1314
        %v1316 = vpop.f32.mrb[0].mxu0
        %1317 = vmatprep.mubr.bf16.mxu0 0
        %1318 = vmatmul.mubr.bf16.gmra.mrb[0].mxu0 %v1171
        %v1319 = vpop.f32.mrb[0].mxu0
        %v1320 = vadd.f32 %v1195, %v1319
        %v1321 = vpop.f32.mrb[0].mxu0
        %v1322 = vpop.f32.mrb[0].mxu0
        %v1323 = vadd.f32 %v1195, %v1322
        %v1324 = vpop.f32.mrb[0].mxu0
        %1325 = vmatprep.mubr.bf16.mxu0 0
        %1326 = vmatmul.mubr.bf16.gmra.mrb[0].mxu0 %v1172
        %v1327 = vpop.f32.mrb[0].mxu0
        %v1328 = vadd.f32 %v1195, %v1327
        %v1329 = vpop.f32.mrb[0].mxu0
        %v1330 = vpop.f32.mrb[0].mxu0
        %v1331 = vadd.f32 %v1195, %v1330
        %v1332 = vpop.f32.mrb[0].mxu0
        %1333 = vmatprep.mubr.bf16.mxu0 0
        %1334 = vmatmul.mubr.bf16.gmra.mrb[0].mxu0 %v1173
        %v1335 = vpop.f32.mrb[0].mxu0
        %v1336 = vadd.f32 %v1195, %v1335
        %v1337 = vpop.f32.mrb[0].mxu0
        %v1338 = vpop.f32.mrb[0].mxu0
        %v1339 = vadd.f32 %v1195, %v1338
        %v1340 = vpop.f32.mrb[0].mxu0
        %1341 = vdwg.mxu0
        %v1342 = vmax.f32 %v1280, 0.0
        %v1343 = vmax.f32 %v1283, 0.0
        %v1344 = vmax.f32 %v1288, 0.0
        %v1345 = vmax.f32 %v1291, 0.0
        %v1346 = vmax.f32 %v1296, 0.0
        %v1347 = vmax.f32 %v1299, 0.0
        %v1348 = vmax.f32 %v1304, 0.0
        %v1349 = vmax.f32 %v1307, 0.0
        %v1350 = vmax.f32 %v1312, 0.0
        %v1351 = vmax.f32 %v1315, 0.0
        %v1352 = vmax.f32 %v1320, 0.0
        %v1353 = vmax.f32 %v1323, 0.0
        %v1354 = vmax.f32 %v1328, 0.0
        %v1355 = vmax.f32 %v1331, 0.0
        %v1356 = vmax.f32 %v1336, 0.0
        %v1357 = vmax.f32 %v1339, 0.0
        %v1358 = vld [vmem:[%s536] sm:$0xff]
        %v1359 = vld [vmem:[%s536 + $0x8] sm:$0xff]
        %v1360 = vld [vmem:[%s536 + $0x10] sm:$0xff]
        %v1361 = vld [vmem:[%s536 + $0x18] sm:$0xff]
        %v1362 = vld [vmem:[%s536 + $0x20] sm:$0xff]
        %v1363 = vld [vmem:[%s536 + $0x28] sm:$0xff]
        %v1364 = vld [vmem:[%s536 + $0x30] sm:$0xff]
        %v1365 = vld [vmem:[%s536 + $0x38] sm:$0xff]
        %v1366 = vld [vmem:[%s536 + $0x40] sm:$0xff]
        %v1367 = vld [vmem:[%s536 + $0x48] sm:$0xff]
        %v1368 = vld [vmem:[%s536 + $0x50] sm:$0xff]
        %v1369 = vld [vmem:[%s536 + $0x58] sm:$0xff]
        %v1370 = vld [vmem:[%s536 + $0x60] sm:$0xff]
        %v1371 = vld [vmem:[%s536 + $0x68] sm:$0xff]
        %v1372 = vld [vmem:[%s536 + $0x70] sm:$0xff]
        %v1373 = vld [vmem:[%s536 + $0x78] sm:$0xff]
        %v1374 = vmul.f32 %v1342, %v1358
        %v1375 = vmul.f32 %v1343, %v1359
        %v1376 = vmul.f32 %v1344, %v1360
        %v1377 = vmul.f32 %v1345, %v1361
        %v1378 = vmul.f32 %v1346, %v1362
        %v1379 = vmul.f32 %v1347, %v1363
        %v1380 = vmul.f32 %v1348, %v1364
        %v1381 = vmul.f32 %v1349, %v1365
        %v1382 = vmul.f32 %v1350, %v1366
        %v1383 = vmul.f32 %v1351, %v1367
        %v1384 = vmul.f32 %v1352, %v1368
        %v1385 = vmul.f32 %v1353, %v1369
        %v1386 = vmul.f32 %v1354, %v1370
        %v1387 = vmul.f32 %v1355, %v1371
        %v1388 = vmul.f32 %v1356, %v1372
        %v1389 = vmul.f32 %v1357, %v1373
        %v1390 = vpack.c.bf16 %v1375, %v1374
        %v1391 = vpack.c.bf16 %v1377, %v1376
        %v1392 = vpack.c.bf16 %v1379, %v1378
        %v1393 = vpack.c.bf16 %v1381, %v1380
        %v1394 = vpack.c.bf16 %v1383, %v1382
        %v1395 = vpack.c.bf16 %v1385, %v1384
        %v1396 = vpack.c.bf16 %v1387, %v1386
        %v1397 = vpack.c.bf16 %v1389, %v1388
        %v1398 = vld [vmem:[#allocation14] sm:$0xf]
        %v1399 = vld [vmem:[#allocation14 + $0x4] sm:$0xf]
        %v1400 = vld [vmem:[#allocation14 + $0x8] sm:$0xf]
        %v1401 = vld [vmem:[#allocation14 + $0xc] sm:$0xf]
        %v1402 = vld [vmem:[#allocation14 + $0x10] sm:$0xf]
        %v1403 = vld [vmem:[#allocation14 + $0x14] sm:$0xf]
        %v1404 = vld [vmem:[#allocation14 + $0x18] sm:$0xf]
        %v1405 = vld [vmem:[#allocation14 + $0x1c] sm:$0xf]
        %v1406 = vld [vmem:[#allocation14 + $0x20] sm:$0xf]
        %v1407 = vld [vmem:[#allocation14 + $0x24] sm:$0xf]
        %v1408 = vld [vmem:[#allocation14 + $0x28] sm:$0xf]
        %v1409 = vld [vmem:[#allocation14 + $0x2c] sm:$0xf]
        %v1410 = vld [vmem:[#allocation14 + $0x30] sm:$0xf]
        %v1411 = vld [vmem:[#allocation14 + $0x34] sm:$0xf]
        %v1412 = vld [vmem:[#allocation14 + $0x38] sm:$0xf]
        %v1413 = vld [vmem:[#allocation14 + $0x3c] sm:$0xf]
        %v1414 = vld [vmem:[%s11] sm:$0x1]
        %v1416 = vlaneseq
        %v1417 = vshrl.u32 %v1416, 7
        %v1418 = vsub.s32 0, %v1417
        %v1419 = vrot.slane %v1414, %v1418
        %v1437 = vunpack.c.l.b16 %v1398
        %v1438 = vunpack.c.l.b16 %v1399
        %v1439 = vunpack.c.l.b16 %v1400
        %v1440 = vunpack.c.l.b16 %v1401
        %v1441 = vunpack.c.l.b16 %v1402
        %v1442 = vunpack.c.l.b16 %v1403
        %v1443 = vunpack.c.l.b16 %v1404
        %v1444 = vunpack.c.l.b16 %v1405
        %v1445 = vunpack.c.l.b16 %v1406
        %v1446 = vunpack.c.l.b16 %v1407
        %v1447 = vunpack.c.l.b16 %v1408
        %v1448 = vunpack.c.l.b16 %v1409
        %v1449 = vunpack.c.l.b16 %v1410
        %v1450 = vunpack.c.l.b16 %v1411
        %v1451 = vunpack.c.l.b16 %v1412
        %v1452 = vunpack.c.l.b16 %v1413
        %v1453 = vpack.c.b16 %v1438, %v1437
        %v1454 = vpack.c.b16 %v1440, %v1439
        %v1455 = vpack.c.b16 %v1442, %v1441
        %v1456 = vpack.c.b16 %v1444, %v1443
        %v1457 = vpack.c.b16 %v1446, %v1445
        %v1458 = vpack.c.b16 %v1448, %v1447
        %v1459 = vpack.c.b16 %v1450, %v1449
        %v1460 = vpack.c.b16 %v1452, %v1451
        %1469 = vmatprep.subr.bf16.mxu0 0
        %1470 = vmatpush1.bf16.msra.mxu0 %v1453
        %1471 = vmatprep.subr.bf16.mxu0 0
        %1472 = vmatpush1.bf16.msra.mxu0 %v1454
        %1473 = vmatprep.subr.bf16.mxu0 0
        %1474 = vmatpush1.bf16.msra.mxu0 %v1455
        %1475 = vmatprep.subr.bf16.mxu0 0
        %1476 = vmatpush1.bf16.msra.mxu0 %v1456
        %1477 = vmatprep.subr.bf16.mxu0 0
        %1478 = vmatpush1.bf16.msra.mxu0 %v1457
        %1479 = vmatprep.subr.bf16.mxu0 0
        %1480 = vmatpush1.bf16.msra.mxu0 %v1458
        %1481 = vmatprep.subr.bf16.mxu0 0
        %1482 = vmatpush1.bf16.msra.mxu0 %v1459
        %1483 = vmatprep.subr.bf16.mxu0 0
        %1484 = vmatpush1.bf16.msra.mxu0 %v1460
        %1485 = vmatprep.subr.bf16.mxu0 0
        %1486 = vmatpush1.bf16.msra.mxu0 0
        %1487 = vmatprep.subr.bf16.mxu0 0
        %1488 = vmatpush1.bf16.msra.mxu0 0
        %1489 = vmatprep.subr.bf16.mxu0 0
        %1490 = vmatpush1.bf16.msra.mxu0 0
        %1491 = vmatprep.subr.bf16.mxu0 0
        %1492 = vmatpush1.bf16.msra.mxu0 0
        %1493 = vmatprep.subr.bf16.mxu0 0
        %1494 = vmatpush1.bf16.msra.mxu0 0
        %1495 = vmatprep.subr.bf16.mxu0 0
        %1496 = vmatpush1.bf16.msra.mxu0 0
        %1497 = vmatprep.subr.bf16.mxu0 0
        %1498 = vmatpush1.bf16.msra.mxu0 0
        %1499 = vmatprep.subr.bf16.mxu0 0
        %1500 = vmatpush1.bf16.msra.mxu0 0
        %1501 = vmatprep.mubr.bf16.mxu0 0
        %1502 = vmatmul.mubr.bf16.gmra.mrb[0].mxu0 %v1390
        %v1503 = vpop.f32.mrb[0].mxu0
        %v1504 = vadd.f32 %v1419, %v1503
        %v1505 = vpop.f32.mrb[0].mxu0
        %v1506 = vpop.f32.mrb[0].mxu0
        %v1507 = vadd.f32 %v1419, %v1506
        %v1508 = vpop.f32.mrb[0].mxu0
        %1509 = vmatprep.mubr.bf16.mxu0 0
        %1510 = vmatmul.mubr.bf16.gmra.mrb[0].mxu0 %v1391
        %v1511 = vpop.f32.mrb[0].mxu0
        %v1512 = vadd.f32 %v1419, %v1511
        %v1513 = vpop.f32.mrb[0].mxu0
        %v1514 = vpop.f32.mrb[0].mxu0
        %v1515 = vadd.f32 %v1419, %v1514
        %v1516 = vpop.f32.mrb[0].mxu0
        %1517 = vmatprep.mubr.bf16.mxu0 0
        %1518 = vmatmul.mubr.bf16.gmra.mrb[0].mxu0 %v1392
        %v1519 = vpop.f32.mrb[0].mxu0
        %v1520 = vadd.f32 %v1419, %v1519
        %v1521 = vpop.f32.mrb[0].mxu0
        %v1522 = vpop.f32.mrb[0].mxu0
        %v1523 = vadd.f32 %v1419, %v1522
        %v1524 = vpop.f32.mrb[0].mxu0
        %1525 = vmatprep.mubr.bf16.mxu0 0
        %1526 = vmatmul.mubr.bf16.gmra.mrb[0].mxu0 %v1393
        %v1527 = vpop.f32.mrb[0].mxu0
        %v1528 = vadd.f32 %v1419, %v1527
        %v1529 = vpop.f32.mrb[0].mxu0
        %v1530 = vpop.f32.mrb[0].mxu0
        %v1531 = vadd.f32 %v1419, %v1530
        %v1532 = vpop.f32.mrb[0].mxu0
        %1533 = vmatprep.mubr.bf16.mxu0 0
        %1534 = vmatmul.mubr.bf16.gmra.mrb[0].mxu0 %v1394
        %v1535 = vpop.f32.mrb[0].mxu0
        %v1536 = vadd.f32 %v1419, %v1535
        %v1537 = vpop.f32.mrb[0].mxu0
        %v1538 = vpop.f32.mrb[0].mxu0
        %v1539 = vadd.f32 %v1419, %v1538
        %v1540 = vpop.f32.mrb[0].mxu0
        %1541 = vmatprep.mubr.bf16.mxu0 0
        %1542 = vmatmul.mubr.bf16.gmra.mrb[0].mxu0 %v1395
        %v1543 = vpop.f32.mrb[0].mxu0
        %v1544 = vadd.f32 %v1419, %v1543
        %v1545 = vpop.f32.mrb[0].mxu0
        %v1546 = vpop.f32.mrb[0].mxu0
        %v1547 = vadd.f32 %v1419, %v1546
        %v1548 = vpop.f32.mrb[0].mxu0
        %1549 = vmatprep.mubr.bf16.mxu0 0
        %1550 = vmatmul.mubr.bf16.gmra.mrb[0].mxu0 %v1396
        %v1551 = vpop.f32.mrb[0].mxu0
        %v1552 = vadd.f32 %v1419, %v1551
        %v1553 = vpop.f32.mrb[0].mxu0
        %v1554 = vpop.f32.mrb[0].mxu0
        %v1555 = vadd.f32 %v1419, %v1554
        %v1556 = vpop.f32.mrb[0].mxu0
        %1557 = vmatprep.mubr.bf16.mxu0 0
        %1558 = vmatmul.mubr.bf16.gmra.mrb[0].mxu0 %v1397
        %v1559 = vpop.f32.mrb[0].mxu0
        %v1560 = vadd.f32 %v1419, %v1559
        %v1561 = vpop.f32.mrb[0].mxu0
        %v1562 = vpop.f32.mrb[0].mxu0
        %v1563 = vadd.f32 %v1419, %v1562
        %v1564 = vpop.f32.mrb[0].mxu0
        %1565 = vdwg.mxu0
        %1566 = vst [vmem:[%s607] sm:$0xff] %v1504
        %1567 = vst [vmem:[%s607 + $0x8] sm:$0xff] %v1507
        %1568 = vst [vmem:[%s607 + $0x10] sm:$0xff] %v1512
        %1569 = vst [vmem:[%s607 + $0x18] sm:$0xff] %v1515
        %1570 = vst [vmem:[%s607 + $0x20] sm:$0xff] %v1520
        %1571 = vst [vmem:[%s607 + $0x28] sm:$0xff] %v1523
        %1572 = vst [vmem:[%s607 + $0x30] sm:$0xff] %v1528
        %1573 = vst [vmem:[%s607 + $0x38] sm:$0xff] %v1531
        %1574 = vst [vmem:[%s607 + $0x40] sm:$0xff] %v1536
        %1575 = vst [vmem:[%s607 + $0x48] sm:$0xff] %v1539
        %1576 = vst [vmem:[%s607 + $0x50] sm:$0xff] %v1544
        %1577 = vst [vmem:[%s607 + $0x58] sm:$0xff] %v1547
        %1578 = vst [vmem:[%s607 + $0x60] sm:$0xff] %v1552
        %1579 = vst [vmem:[%s607 + $0x68] sm:$0xff] %v1555
        %1580 = vst [vmem:[%s607 + $0x70] sm:$0xff] %v1560
        %1581 = vst [vmem:[%s607 + $0x78] sm:$0xff] %v1563
        %s1582 = sand.u32 %s317, 1
        %s1583 = scalar_lea.sflag [#allocation4], %s1582
        %s1584 = sand.u32 %s317, 1
        %s1585 = smul.addr %s1584, 128
        %s1586 = scalar_lea.vmem [#allocation16], %s1585
        // Predicated region
        $region101: #{tpu_custom_call.1} parent=67 // pred_check
          %p1587 = pneg %p327
        $region102: #{tpu_custom_call.1} parent=67 // pred_check_branch
          %1589 = sbr.rel (%p1587) target = $region104
        $region103: #{tpu_custom_call.1} parent=67 // pred_region
          %s1590 = smul.u32 16, %s37
          %s1592 = ssub.s32 2048, 2048
          %1593 = vsyncadd %s1583, %s1592
          %s1594 = smul.addr %s1590, 128
          %s1595 = scalar_lea.hbm %s12, %s1594
          %s1596 = sshll.u32 %s1586, 4
          %s1597 = int_to_ptr.vmem [resolvable:$true] %s1596
          %1602 = dma.vmem_to_hbm [thread:$0]  %s1597, 2048, %s1595, %s1583, 128, 128, 8
        $region104: #{tpu_custom_call.1} parent=67 // pred_fallthru
          _
      $region68: #{tpu_custom_call.1} parent=5 // pred_fallthru
        _
      %p1603 = scmp.le.s32.totalorder 2, %s32
      // Predicated region
      $region105: #{tpu_custom_call.1} parent=5 // pred_check
        %p1604 = pneg %p1603
      $region106: #{tpu_custom_call.1} parent=5 // pred_check_branch
        %1606 = sbr.rel (%p1604) target = $region108
      $region107: #{tpu_custom_call.1} parent=5 // pred_region
        %s1607 = ssub.s32 %s32, 2
        // Predicated region
        $region109: #{tpu_custom_call.1} parent=107 // pred_check
          %p1608 = pneg %p333
        $region110: #{tpu_custom_call.1} parent=107 // pred_check_branch
          %1610 = sbr.rel (%p1608) target = $region112
        $region111: #{tpu_custom_call.1} parent=107 // pred_region
          %s1611 = sand.u32 %s318, 1
          %s1612 = scalar_lea.sflag [#allocation4], %s1611
          %s1613 = sand.u32 %s318, 1
          %s1614 = smul.addr %s1613, 128
          %s1615 = scalar_lea.vmem [#allocation16], %s1614
          %1616 = dma.done %s1612, 2048
        $region112: #{tpu_custom_call.1} parent=107 // pred_fallthru
          _
      $region108: #{tpu_custom_call.1} parent=5 // pred_fallthru
        _
    $region6: #{tpu_custom_call.1} parent=1 // loop_footer
      %s36 = sadd.s32 1, %s32
    $region7: #{tpu_custom_call.1} parent=1 // loop_footer_branch
      %31 = sbr.rel target = $region3
    $region8: #{tpu_custom_call.1} parent=1 // loop_exit
      _
    %1617 = vsyncpa [#allocation3], 1
    %s1618 = scalar_lea.sflag [#allocation3], 1
    %1619 = vsyncpa %s1618, 1
    %1620 = vsyncpa [#allocation6], 1
    %s1621 = scalar_lea.sflag [#allocation6], 1
    %1622 = vsyncpa %s1621, 1
    %1623 = vsyncpa [#allocation9], 1
    %s1624 = scalar_lea.sflag [#allocation9], 1
    %1625 = vsyncpa %s1624, 1
    %1626 = vsyncpa [#allocation12], 1
    %1627 = vsyncpa [#allocation15], 1
    %1628 = vsyncpa [#allocation4], 1
    %s1629 = scalar_lea.sflag [#allocation4], 1
    %1630 = vsyncpa %s1629, 1

</llo_original>
